<compile_context>
chip_gen: v6e
topology: v6e:2x2x1
jax: 0.10.0
libtpu: 0.0.40
codegen_flags: <defaults>
</compile_context>

<pallas_src>
import functools

import jax
import jax.numpy as jnp
from jax import lax
from jax.experimental import pallas as pl
from jax.experimental.pallas import tpu as pltpu


def _round_up(v, m):
    return (v + m - 1) // m * m


# ----------------------------------------------------------------------------
# Pallas kernel: PointConv MLP + max aggregation (flat 2-D MXU matmuls)
#   feats: [T*K, F]  bf16 = [x_j, pos_j - pos_i, 1, 0-pad], center-major row order
#   out  : [T, H2p]  f32  = max over the K neighbor slots of relu(relu(feats@W1)@W2+b2)
# ----------------------------------------------------------------------------
def pointconv_kernel(feats_ref, w1_ref, w2_ref, b2_ref, out_ref, *, k):
    feats = feats_ref[...]                                              # [T*K, F] bf16
    # Layer 1: b1 is folded into w1 via the constant-1 feature column (no VPU bias add).
    h = jnp.dot(feats, w1_ref[...], preferred_element_type=jnp.float32)  # MXU, f32 acc
    h = jnp.maximum(h, 0.0)                                             # [T*K, H1] f32
    # Layer 2.
    g = jnp.dot(h.astype(w2_ref.dtype), w2_ref[...],
                preferred_element_type=jnp.float32)                     # [T*K, H2p] f32
    g = jnp.maximum(g + b2_ref[...], 0.0)
    tk, h2p = g.shape
    # Free re-view: k is a multiple of 8 and h2p a multiple of 128 (f32 tile aligned).
    g = g.reshape(tk // k, k, h2p)                                      # [T, K, H2p]
    out_ref[...] = jnp.max(g, axis=1)                                   # [T, H2p] lane-dense


def _pick_tile_s(S, K, target_rows=8192):
    """Centers per grid step: multiple of 8, ~target_rows edge rows, grid >= 2 if possible."""
    t = min(max(1, target_rows // max(K, 1)), S)
    if S > 8:                      # keep >= 2 grid steps so v7x's two TensorCores get work
        t = min(t, -(-S // 2))     # ceil(S / 2)
    return max(8, (t // 8) * 8)


def pointconv_pallas(feats_flat, w1_aug, w2p, b2p, *, S_pad, K_pad, tile_s):
    """feats_flat: [S_pad*K_pad, Fp] bf16. Returns [S_pad, H2p] f32 (padded, lane-dense)."""
    Fp = feats_flat.shape[1]
    H1 = w1_aug.shape[1]
    H2p = w2p.shape[1]
    tile_rows = tile_s * K_pad
    grid = (S_pad // tile_s,)

    return pl.pallas_call(
        functools.partial(pointconv_kernel, k=K_pad),
        out_shape=jax.ShapeDtypeStruct((S_pad, H2p), jnp.float32),
        grid_spec=pltpu.PrefetchScalarGridSpec(
            num_scalar_prefetch=0,
            grid=grid,
            in_specs=[
                pl.BlockSpec((tile_rows, Fp), lambda i: (i, 0)),   # edge features (bf16)
                pl.BlockSpec((Fp, H1), lambda i: (0, 0)),          # W1 (+ folded b1), resident
                pl.BlockSpec((H1, H2p), lambda i: (0, 0)),         # W2 (padded), resident
                pl.BlockSpec((1, H2p), lambda i: (0, 0)),          # b2 (padded)
            ],
            out_specs=pl.BlockSpec((tile_s, H2p), lambda i: (i, 0)),
        ),
        compiler_params=pltpu.CompilerParams(
            dimension_semantics=("parallel",),
            vmem_limit_bytes=32 * 1024 * 1024,   # safe on v5e/v6e/v7x; per-step footprint ~a few MiB
        ),
    )(feats_flat, w1_aug, w2p, b2p)


# ----------------------------------------------------------------------------
# Plain-JAX glue: farthest point sampling and radius neighbor search.
# ----------------------------------------------------------------------------
def _fps_single(pos_b, m):
    """Deterministic FPS over one cloud. pos_b: [N,3] -> local indices [m]."""
    # TODO(synk): torch_cluster.fps uses a random start point by default; we start at 0.
    N = pos_b.shape[0]

    def body(i, state):
        idx, dists = state
        last = pos_b[idx[i - 1]]
        d = jnp.sum((pos_b - last) ** 2, axis=-1)
        dists = jnp.minimum(dists, d)
        nxt = jnp.argmax(dists).astype(jnp.int32)
        return idx.at[i].set(nxt), dists

    idx0 = jnp.zeros((m,), jnp.int32)
    dists0 = jnp.full((N,), jnp.inf, jnp.float32)
    idx, _ = lax.fori_loop(1, m, body, (idx0, dists0))
    return idx


def _radius_group_single(pos_b, centers_local_idx, r, K, K_pad):
    """First K in-radius neighbors (index order) per center; invalid/padded slots -> self."""
    N = pos_b.shape[0]
    centers = pos_b[centers_local_idx]                                     # [M, 3]
    d2 = jnp.sum((centers[:, None, :] - pos_b[None, :, :]) ** 2, axis=-1)  # [M, N]
    within = d2 < r * r
    ar = jnp.arange(N, dtype=jnp.int32)
    keys = jnp.where(within, ar[None, :], N + ar[None, :])
    # K smallest keys == first K in-radius neighbors (index order); top_k avoids a full sort.
    neg_top, _ = lax.top_k(-keys, K)                                       # [M, K]
    keys_sel = -neg_top
    valid = keys_sel < N
    self_idx = centers_local_idx[:, None].astype(jnp.int32)                # [M, 1]
    # Invalid slots -> the center itself (always in radius for r > 0; duplicates never
    # change the max, and PointNetConv's default add_self_loops=True adds this edge anyway).
    nbr = jnp.where(valid, keys_sel, self_idx)
    if K_pad > K:                                                          # pad K to 8-multiple
        pad = jnp.broadcast_to(self_idx, (centers_local_idx.shape[0], K_pad - K))
        nbr = jnp.concatenate([nbr, pad], axis=-1)
    return nbr                                                             # [M, K_pad]


def sa_module_forward(x, pos, batch, params, *, B, N, ratio, r, num_samples):
    """Equivalent of SAModule.forward(x, pos, batch, num_samples)."""
    C_in = x.shape[1]
    M = max(1, int(ratio * N))       # sampled points per cloud
    K = num_samples
    S = B * M

    w1, b1, w2, b2 = params
    H1 = w1.shape[1]
    H2 = w2.shape[1]

    pos_r = pos.reshape(B, N, 3)

    # fps(pos, batch, ratio)
    idx_local = jax.vmap(functools.partial(_fps_single, m=M))(pos_r)       # [B, M]
    offsets = (jnp.arange(B, dtype=jnp.int32) * N)[:, None]                # [B, 1]
    idx_global = (idx_local + offsets).reshape(-1)                         # [S]

    # radius(pos, pos[idx], r, batch, batch[idx], max_num_neighbors); K padded to 8-multiple.
    K_pad = _round_up(K, 8)
    nbr_local = jax.vmap(
        functools.partial(_radius_group_single, r=r, K=K, K_pad=K_pad)
    )(pos_r, idx_local)                                                    # [B, M, K_pad]
    nbr_global = (nbr_local + offsets[..., None]).reshape(S, K_pad)

    # PointConv edge features: [x_j, pos_j - pos_i, 1] (ones column folds b1 into W1),
    # zero-padded to an 8-multiple feature width, flattened center-major.
    # TODO(synk): this gather + concat still materializes the K-amplified edge tensor via
    # XLA/HBM; a fully in-kernel gather needs Mosaic dynamic-gather and is left out.
    center_pos = pos[idx_global]                                           # [S, 3]
    nbr_pos = pos[nbr_global]                                              # [S, K_pad, 3]
    nbr_x = x[nbr_global]                                                  # [S, K_pad, C_in]
    rel = nbr_pos - center_pos[:, None, :]
    ones = jnp.ones((S, K_pad, 1), x.dtype)
    F_raw = C_in + 3 + 1
    F_pad = _round_up(F_raw, 8)
    feats = jnp.concatenate([nbr_x, rel, ones], axis=-1)                   # [S, K_pad, F_raw]
    if F_pad != F_raw:
        feats = jnp.pad(feats, ((0, 0), (0, 0), (0, F_pad - F_raw)))

    # Pad the center axis so tile_s | S_pad (dummy centers are sliced off afterwards).
    tile_s = _pick_tile_s(S, K_pad)
    S_pad = _round_up(S, tile_s)
    if S_pad != S:
        feats = jnp.pad(feats, ((0, S_pad - S), (0, 0), (0, 0)))
    feats_flat = feats.reshape(S_pad * K_pad, F_pad).astype(jnp.bfloat16)

    # Weights: fold b1 into W1 at the ones column; pad W2/b2 to a lane-dense H2p width.
    H2p = _round_up(H2, 128)
    w1_aug = jnp.zeros((F_pad, H1), jnp.float32)
    w1_aug = w1_aug.at[:C_in + 3, :].set(w1)
    w1_aug = w1_aug.at[C_in + 3, :].set(b1.reshape(-1))
    w1_aug = w1_aug.astype(jnp.bfloat16)
    w2p = jnp.zeros((H1, H2p), jnp.bfloat16).at[:, :H2].set(w2.astype(jnp.bfloat16))
    b2p = jnp.zeros((1, H2p), jnp.float32).at[:, :H2].set(b2.reshape(1, -1).astype(jnp.float32))

    out = pointconv_pallas(feats_flat, w1_aug, w2p, b2p,
                           S_pad=S_pad, K_pad=K_pad, tile_s=tile_s)        # [S_pad, H2p] f32
    x_out = out[:S, :H2]

    pos_out = center_pos
    batch_out = batch[idx_global]
    return x_out, pos_out, batch_out


# ----------------------------------------------------------------------------
if __name__ == "__main__":
    key = jax.random.PRNGKey(0)
    B, N, C_in = 2, 64, 4          # 2 clouds of 64 points, 4 input features each
    ratio, r, num_samples = 0.5, 0.3, 16
    H1, H2 = 32, 64                # nn = Seq(Lin(C_in+3, 32), ReLU, Lin(32, 64), ReLU)

    k_pos, k_x, k_w1, k_w2 = jax.random.split(key, 4)
    pos = jax.random.uniform(k_pos, (B * N, 3), jnp.float32)
    x = jax.random.normal(k_x, (B * N, C_in), jnp.float32)
    batch = jnp.repeat(jnp.arange(B, dtype=jnp.int32), N)

    F_in = C_in + 3
    w1 = jax.random.normal(k_w1, (F_in, H1), jnp.float32) * (2.0 / F_in) ** 0.5
    b1 = jnp.zeros((1, H1), jnp.float32)
    w2 = jax.random.normal(k_w2, (H1, H2), jnp.float32) * (2.0 / H1) ** 0.5
    b2 = jnp.zeros((1, H2), jnp.float32)
    params = (w1, b1, w2, b2)

    fwd = jax.jit(functools.partial(
        sa_module_forward, B=B, N=N, ratio=ratio, r=r, num_samples=num_samples))
    x_out, pos_out, batch_out = fwd(x, pos, batch, params)
    jax.block_until_ready((x_out, pos_out, batch_out))

    M = int(ratio * N)
    assert x_out.shape == (B * M, H2)
    assert pos_out.shape == (B * M, 3)
    assert batch_out.shape == (B * M,)
    assert bool(jnp.all(jnp.isfinite(x_out)))
    print("KERNEL_OK")
</pallas_src>

<mosaic_0001>
module attributes {stable_mosaic.version = 11 : i64} {
  func.func @pointconv_kernel(%arg0: i32, %arg1: memref<512x8xbf16, #tpu.memory_space<vmem>>, %arg2: memref<8x32xbf16, #tpu.memory_space<vmem>>, %arg3: memref<32x128xbf16, #tpu.memory_space<vmem>>, %arg4: memref<1x128xf32, #tpu.memory_space<vmem>>, %arg5: memref<32x128xf32, #tpu.memory_space<vmem>>) attributes {dimension_semantics = [#tpu.dimension_semantics<parallel>], iteration_bounds = array<i64: 2>, scalar_prefetch = 0 : i64, scratch_operands = 0 : i64, tpu.core_type = #tpu.core_type<tc>, window_params = [{transform_indices = @transform_0, window_bounds = array<i64: 512, 8>}, {pipeline_mode = #tpu.pipeline_mode<synchronous>, transform_indices = @transform_1, window_bounds = array<i64: 8, 32>}, {pipeline_mode = #tpu.pipeline_mode<synchronous>, transform_indices = @transform_2, window_bounds = array<i64: 32, 128>}, {pipeline_mode = #tpu.pipeline_mode<synchronous>, transform_indices = @transform_3, window_bounds = array<i64: 1, 128>}, {transform_indices = @transform_4, window_bounds = array<i64: 32, 128>}]} {
    %c0 = arith.constant 0 : index
    %c0_0 = arith.constant 0 : index
    %0 = vector.load %arg1[%c0, %c0_0] : memref<512x8xbf16, #tpu.memory_space<vmem>>, vector<512x8xbf16>
    %c0_1 = arith.constant 0 : index
    %c0_2 = arith.constant 0 : index
    %1 = vector.load %arg2[%c0_1, %c0_2] : memref<8x32xbf16, #tpu.memory_space<vmem>>, vector<8x32xbf16>
    %cst = arith.constant dense<0.000000e+00> : vector<512x32xf32>
    %2 = tpu.matmul %0, %1, %cst {dimension_numbers = #tpu.dot_dimension_numbers<[1], [0], [0], [1], [0, 0, 1, 1], [], []>} : vector<512x8xbf16>, vector<8x32xbf16>, vector<512x32xf32> -> vector<512x32xf32>
    %cst_3 = arith.constant 0.000000e+00 : f32
    %3 = vector.broadcast %cst_3 : f32 to vector<512x32xf32>
    %4 = arith.maximumf %2, %3 : vector<512x32xf32>
    %5 = arith.truncf %4 : vector<512x32xf32> to vector<512x32xbf16>
    %c0_4 = arith.constant 0 : index
    %c0_5 = arith.constant 0 : index
    %6 = vector.load %arg3[%c0_4, %c0_5] : memref<32x128xbf16, #tpu.memory_space<vmem>>, vector<32x128xbf16>
    %cst_6 = arith.constant dense<0.000000e+00> : vector<512x128xf32>
    %7 = tpu.matmul %5, %6, %cst_6 {dimension_numbers = #tpu.dot_dimension_numbers<[1], [0], [0], [1], [0, 0, 1, 1], [], []>} : vector<512x32xbf16>, vector<32x128xbf16>, vector<512x128xf32> -> vector<512x128xf32>
    %c0_7 = arith.constant 0 : index
    %c0_8 = arith.constant 0 : index
    %8 = vector.load %arg4[%c0_7, %c0_8] : memref<1x128xf32, #tpu.memory_space<vmem>>, vector<1x128xf32>
    %9 = vector.broadcast %8 : vector<1x128xf32> to vector<512x128xf32>
    %10 = arith.addf %7, %9 : vector<512x128xf32>
    %cst_9 = arith.constant 0.000000e+00 : f32
    %11 = vector.broadcast %cst_9 : f32 to vector<512x128xf32>
    %12 = arith.maximumf %10, %11 : vector<512x128xf32>
    %13 = vector.shape_cast %12 : vector<512x128xf32> to vector<32x16x128xf32>
    %cst_10 = arith.constant dense<0xFF800000> : vector<32x128xf32>
    %14 = vector.multi_reduction <maximumf>, %13, %cst_10 [1] : vector<32x16x128xf32> to vector<32x128xf32>
    %c0_11 = arith.constant 0 : index
    %c0_12 = arith.constant 0 : index
    %15 = vector.load %arg5[%c0_11, %c0_12] : memref<32x128xf32, #tpu.memory_space<vmem>>, vector<32x128xf32>
    tpu.vector_store %arg5[%c0_11, %c0_12], %14 {strides = array<i32>} : memref<32x128xf32, #tpu.memory_space<vmem>>, vector<32x128xf32>,
    return
  }
  func.func @transform_0(%arg0: i32) -> (i32, i32) {
    %c0_i32 = arith.constant 0 : i32
    %c0_i32_0 = arith.constant 0 : i32
    return %arg0, %c0_i32 : i32, i32
  }
  func.func @transform_1(%arg0: i32) -> (i32, i32) {
    %c0_i32 = arith.constant 0 : i32
    %c0_i32_0 = arith.constant 0 : i32
    %c0_i32_1 = arith.constant 0 : i32
    return %c0_i32, %c0_i32_0 : i32, i32
  }
  func.func @transform_2(%arg0: i32) -> (i32, i32) {
    %c0_i32 = arith.constant 0 : i32
    %c0_i32_0 = arith.constant 0 : i32
    %c0_i32_1 = arith.constant 0 : i32
    return %c0_i32, %c0_i32_0 : i32, i32
  }
  func.func @transform_3(%arg0: i32) -> (i32, i32) {
    %c0_i32 = arith.constant 0 : i32
    %c0_i32_0 = arith.constant 0 : i32
    %c0_i32_1 = arith.constant 0 : i32
    return %c0_i32, %c0_i32_0 : i32, i32
  }
  func.func @transform_4(%arg0: i32) -> (i32, i32) {
    %c0_i32 = arith.constant 0 : i32
    %c0_i32_0 = arith.constant 0 : i32
    return %arg0, %c0_i32 : i32, i32
  }
}

</mosaic_0001>

<llo_original>
// kernel: custom-call.4
$region0: #{custom-call.4}
  %s0 = inlined_call_operand.vmem [shape: f32[2,64], index: 0, kind: output, shape index: {}]

// kernel: sa_module_forward.1
$region0: #{sa_module_forward.1}
  #allocation0 [shape = 'u32[]', space=smem, size = 0x4, offset = 0x4, fixed_abs, tag = 'smem constant byte address 0x4 - core index']
  #allocation1 [shape = 'u32[144,128]{1,0:T(1,128)}', space=vmem, size = 0x12000, scoped, tag = 'internal scratch']
  %s0 = inlined_call_operand.vmem [shape: bf16[1024,8], index: 0, kind: input, shape index: {}]
  %s1 = inlined_call_operand.vmem [shape: bf16[8,32], index: 1, kind: input, shape index: {}]
  %s2 = inlined_call_operand.vmem [shape: bf16[32,128], index: 2, kind: input, shape index: {}]
  %s3 = inlined_call_operand.vmem [shape: f32[1,128], index: 3, kind: input, shape index: {}]
  %s4 = inlined_call_operand.hbm [shape: f32[64,128], index: 4, kind: output, shape index: {}]
  %s5 = sld [smem:[#allocation0]]
  $region49: #{sa_module_forward.1} parent=0
    _
  %s7 = ssub.s32 1, %s5
  %s8 = scalar_select 0, %s7, %s5
  $region1: #{sa_module_forward.1} parent=0
    #allocation2 [shape = 'u8[32768]{0}', space=vmem, size = 0x8000, scoped, tag = 'output window, operand 0']
    #allocation3 [shape = 's32[2]{0}', space=sflag, size = 0x8, scoped, tag = 'scoped memory for sa_module_forward.1']
    %9 = vsyncpa [#allocation3], 0
    %s10 = scalar_lea.sflag [#allocation3], 1
    %11 = vsyncpa %s10, 0
    loop: start=0, step=1, limit=4
    $region2: #{sa_module_forward.1} parent=1 // loop_pre_header
      _
    $region3: #{sa_module_forward.1} parent=1 // loop_header
      %s13 = sphi 0, %s17
      %p14 = scmp.ge.s32.totalorder %s13, 4
      %s23 = sphi 0, %s25
      %s26 = sphi 0, %s23
      %s27 = sphi 0, %s26
      %s43 = sphi 0, %s27
      %s47 = sphi 0, %s47
      %s49 = sphi 0, %s47
      %s50 = sphi 0, %s49
      %s64 = sphi 0, %s50
      %s68 = sphi 0, %s68
      %s70 = sphi 0, %s68
      %s71 = sphi 0, %s70
      %s85 = sphi 0, %s71
      %s89 = sphi 0, %s89
      %s91 = sphi 0, %s89
      %s92 = sphi 0, %s91
      %s106 = sphi 0, %s92
      %s112 = sphi 0, %s114
      %s115 = sphi 0, %s112
      %s116 = sphi 0, %s115
      %s132 = sphi 0, %s116
    $region4: #{sa_module_forward.1} parent=1 // loop_header_branch
      %16 = sbr.rel (%p14) target = $region8
    $region5: #{sa_module_forward.1} parent=1 // loop_body
      %s18 = ssub.s32 %s13, 1
      %s19 = ssub.s32 %s13, 2
      %s20 = sadd.s32 %s13, 1
      %s21 = ssub.s32 %s13, %s20
      %p22 = scmp.eq.s32.totalorder %s21, 0
      %s24 = sadd.s32 %s23, 1
      %s25 = scalar_select %p22, %s23, %s24
      %p28 = pneg %p22
      %p29 = scmp.eq.s32.totalorder %s13, 1
      %p30 = por %p28, %p29
      %p31 = scmp.ne.s32.totalorder %s23, %s26
      %p32 = scmp.eq.s32.totalorder %s13, 0
      %p33 = por %p31, %p32
      %p34 = scmp.ne.s32.totalorder %s23, %s26
      %p35 = scmp.eq.s32.totalorder %s18, 1
      %p36 = por %p34, %p35
      %p37 = scmp.ne.s32.totalorder %s26, %s27
      %p38 = scmp.eq.s32.totalorder %s18, 0
      %p39 = por %p37, %p38
      %p40 = scmp.ne.s32.totalorder %s26, %s27
      %p41 = scmp.eq.s32.totalorder %s19, 1
      %p42 = por %p40, %p41
      %p44 = scmp.ne.s32.totalorder %s27, %s43
      %p45 = scmp.eq.s32.totalorder %s19, 0
      %p46 = por %p44, %p45
      %s48 = sadd.s32 %s47, 1
      %p51 = scmp.eq.s32.totalorder %s13, 1
      %p52 = scmp.ne.s32.totalorder %s47, %s49
      %p53 = scmp.eq.s32.totalorder %s13, 0
      %p54 = por %p52, %p53
      %p55 = scmp.ne.s32.totalorder %s47, %s49
      %p56 = scmp.eq.s32.totalorder %s18, 1
      %p57 = por %p55, %p56
      %p58 = scmp.ne.s32.totalorder %s49, %s50
      %p59 = scmp.eq.s32.totalorder %s18, 0
      %p60 = por %p58, %p59
      %p61 = scmp.ne.s32.totalorder %s49, %s50
      %p62 = scmp.eq.s32.totalorder %s19, 1
      %p63 = por %p61, %p62
      %p65 = scmp.ne.s32.totalorder %s50, %s64
      %p66 = scmp.eq.s32.totalorder %s19, 0
      %p67 = por %p65, %p66
      %s69 = sadd.s32 %s68, 1
      %p72 = scmp.eq.s32.totalorder %s13, 1
      %p73 = scmp.ne.s32.totalorder %s68, %s70
      %p74 = scmp.eq.s32.totalorder %s13, 0
      %p75 = por %p73, %p74
      %p76 = scmp.ne.s32.totalorder %s68, %s70
      %p77 = scmp.eq.s32.totalorder %s18, 1
      %p78 = por %p76, %p77
      %p79 = scmp.ne.s32.totalorder %s70, %s71
      %p80 = scmp.eq.s32.totalorder %s18, 0
      %p81 = por %p79, %p80
      %p82 = scmp.ne.s32.totalorder %s70, %s71
      %p83 = scmp.eq.s32.totalorder %s19, 1
      %p84 = por %p82, %p83
      %p86 = scmp.ne.s32.totalorder %s71, %s85
      %p87 = scmp.eq.s32.totalorder %s19, 0
      %p88 = por %p86, %p87
      %s90 = sadd.s32 %s89, 1
      %p93 = scmp.eq.s32.totalorder %s13, 1
      %p94 = scmp.ne.s32.totalorder %s89, %s91
      %p95 = scmp.eq.s32.totalorder %s13, 0
      %p96 = por %p94, %p95
      %p97 = scmp.ne.s32.totalorder %s89, %s91
      %p98 = scmp.eq.s32.totalorder %s18, 1
      %p99 = por %p97, %p98
      %p100 = scmp.ne.s32.totalorder %s91, %s92
      %p101 = scmp.eq.s32.totalorder %s18, 0
      %p102 = por %p100, %p101
      %p103 = scmp.ne.s32.totalorder %s91, %s92
      %p104 = scmp.eq.s32.totalorder %s19, 1
      %p105 = por %p103, %p104
      %p107 = scmp.ne.s32.totalorder %s92, %s106
      %p108 = scmp.eq.s32.totalorder %s19, 0
      %p109 = por %p107, %p108
      %s110 = ssub.s32 %s13, %s20
      %p111 = scmp.eq.s32.totalorder %s110, 0
      %s113 = sadd.s32 %s112, 1
      %s114 = scalar_select %p111, %s112, %s113
      %p117 = pneg %p111
      %p118 = scmp.eq.s32.totalorder %s13, 1
      %p119 = por %p117, %p118
      %p120 = scmp.ne.s32.totalorder %s112, %s115
      %p121 = scmp.eq.s32.totalorder %s13, 0
      %p122 = por %p120, %p121
      %p123 = scmp.ne.s32.totalorder %s112, %s115
      %p124 = scmp.eq.s32.totalorder %s18, 1
      %p125 = por %p123, %p124
      %p126 = scmp.ne.s32.totalorder %s115, %s116
      %p127 = scmp.eq.s32.totalorder %s18, 0
      %p128 = por %p126, %p127
      %p129 = scmp.ne.s32.totalorder %s115, %s116
      %p130 = scmp.eq.s32.totalorder %s19, 1
      %p131 = por %p129, %p130
      %p133 = scmp.ne.s32.totalorder %s116, %s132
      %p134 = scmp.eq.s32.totalorder %s19, 0
      %p135 = por %p133, %p134
      %p136 = scmp.le.s32.totalorder 1, %s13
      %p137 = scmp.lt.s32.totalorder %s13, 3
      %p138 = pnand %p136, %p137
      %p139 = pneg %p138
      // Predicated region
      $region9: #{sa_module_forward.1} parent=5 // pred_check
        _
      $region10: #{sa_module_forward.1} parent=5 // pred_check_branch
        %141 = sbr.rel (%p138) target = $region12
      $region11: #{sa_module_forward.1} parent=5 // pred_region
        %s142 = ssub.s32 %s13, 1
        // Predicated region
        $region13: #{sa_module_forward.1} parent=11 // pred_check
          %p143 = pneg %p60
        $region14: #{sa_module_forward.1} parent=11 // pred_check_branch
          %145 = sbr.rel (%p143) target = $region16
        $region15: #{sa_module_forward.1} parent=11 // pred_region
          _
        $region16: #{sa_module_forward.1} parent=11 // pred_fallthru
          _
        // Predicated region
        $region17: #{sa_module_forward.1} parent=11 // pred_check
          %p146 = pneg %p81
        $region18: #{sa_module_forward.1} parent=11 // pred_check_branch
          %148 = sbr.rel (%p146) target = $region20
        $region19: #{sa_module_forward.1} parent=11 // pred_region
          _
        $region20: #{sa_module_forward.1} parent=11 // pred_fallthru
          _
        // Predicated region
        $region21: #{sa_module_forward.1} parent=11 // pred_check
          %p149 = pneg %p102
        $region22: #{sa_module_forward.1} parent=11 // pred_check_branch
          %151 = sbr.rel (%p149) target = $region24
        $region23: #{sa_module_forward.1} parent=11 // pred_region
          _
        $region24: #{sa_module_forward.1} parent=11 // pred_fallthru
          _
      $region12: #{sa_module_forward.1} parent=5 // pred_fallthru
        _
      %p152 = scmp.lt.s32.totalorder %s13, 2
      // Predicated region
      $region25: #{sa_module_forward.1} parent=5 // pred_check
        %p153 = pneg %p152
      $region26: #{sa_module_forward.1} parent=5 // pred_check_branch
        %155 = sbr.rel (%p153) target = $region28
      $region27: #{sa_module_forward.1} parent=5 // pred_region
        // Predicated region
        $region29: #{sa_module_forward.1} parent=27 // pred_check
          %p156 = pneg %p33
        $region30: #{sa_module_forward.1} parent=27 // pred_check_branch
          %158 = sbr.rel (%p156) target = $region32
        $region31: #{sa_module_forward.1} parent=27 // pred_region
          %s159 = smul.u32 64, %s13
          %p160 = scmp.lt.s32.totalorder %s159, 127
          %s161 = scalar_select %p160, %s159, 127
          %s162 = smul.addr %s161, 4
          %s163 = scalar_lea.vmem %s0, %s162
          %s164 = smul.u32 64, %s13
        $region32: #{sa_module_forward.1} parent=27 // pred_fallthru
          _
      $region28: #{sa_module_forward.1} parent=5 // pred_fallthru
        _
      %p165 = scmp.le.s32.totalorder 1, %s13
      %p166 = scmp.lt.s32.totalorder %s13, 3
      %p167 = pnand %p165, %p166
      %p168 = pneg %p167
      // Predicated region
      $region33: #{sa_module_forward.1} parent=5 // pred_check
        _
      $region34: #{sa_module_forward.1} parent=5 // pred_check_branch
        %170 = sbr.rel (%p167) target = $region36
      $region35: #{sa_module_forward.1} parent=5 // pred_region
        %s171 = ssub.s32 %s13, 1
        %s172 = smul.u32 64, %s18
        %p173 = scmp.lt.s32.totalorder %s172, 127
        %s174 = scalar_select %p173, %s172, 127
        %s175 = smul.addr %s174, 4
        %s176 = scalar_lea.vmem %s0, %s175
        %p177 = pneg %p39
        %p178 = pneg %p36
        %p179 = pneg %p60
        %p180 = pneg %p57
        %p181 = pneg %p81
        %p182 = pneg %p78
        %p183 = pneg %p102
        %p184 = pneg %p99
        %p185 = pneg %p128
        %p186 = pneg %p125
        %s187 = sand.u32 %s115, 1
        %s188 = scalar_lea.sflag [#allocation3], %s187
        %s189 = sand.u32 %s115, 1
        %s190 = smul.addr %s189, 32
        %s191 = scalar_lea.vmem [#allocation2], %s190
        %s192 = smul.u32 64, %s18
        %p193 = scmp.lt.s32.totalorder %s192, 127
        %s194 = scalar_select %p193, %s192, 127
        %s195 = smul.addr %s194, 4
        %s196 = scalar_lea.vmem %s0, %s195
        %s197 = smul.u32 64, %s18
        %s198 = smul.u32 4, %s18
        %v200 = vld [vmem:[%s196] sm:$0xf]
        %v201 = vld [vmem:[%s196 + $0x4] sm:$0xf]
        %v202 = vld [vmem:[%s196 + $0x8] sm:$0xf]
        %v203 = vld [vmem:[%s196 + $0xc] sm:$0xf]
        %v204 = vld [vmem:[%s196 + $0x10] sm:$0xf]
        %v205 = vld [vmem:[%s196 + $0x14] sm:$0xf]
        %v206 = vld [vmem:[%s196 + $0x18] sm:$0xf]
        %v207 = vld [vmem:[%s196 + $0x1c] sm:$0xf]
        %v208 = vld [vmem:[%s196 + $0x20] sm:$0xf]
        %v209 = vld [vmem:[%s196 + $0x24] sm:$0xf]
        %v210 = vld [vmem:[%s196 + $0x28] sm:$0xf]
        %v211 = vld [vmem:[%s196 + $0x2c] sm:$0xf]
        %v212 = vld [vmem:[%s196 + $0x30] sm:$0xf]
        %v213 = vld [vmem:[%s196 + $0x34] sm:$0xf]
        %v214 = vld [vmem:[%s196 + $0x38] sm:$0xf]
        %v215 = vld [vmem:[%s196 + $0x3c] sm:$0xf]
        %v216 = vld [vmem:[%s196 + $0x40] sm:$0xf]
        %v217 = vld [vmem:[%s196 + $0x44] sm:$0xf]
        %v218 = vld [vmem:[%s196 + $0x48] sm:$0xf]
        %v219 = vld [vmem:[%s196 + $0x4c] sm:$0xf]
        %v220 = vld [vmem:[%s196 + $0x50] sm:$0xf]
        %v221 = vld [vmem:[%s196 + $0x54] sm:$0xf]
        %v222 = vld [vmem:[%s196 + $0x58] sm:$0xf]
        %v223 = vld [vmem:[%s196 + $0x5c] sm:$0xf]
        %v224 = vld [vmem:[%s196 + $0x60] sm:$0xf]
        %v225 = vld [vmem:[%s196 + $0x64] sm:$0xf]
        %v226 = vld [vmem:[%s196 + $0x68] sm:$0xf]
        %v227 = vld [vmem:[%s196 + $0x6c] sm:$0xf]
        %v228 = vld [vmem:[%s196 + $0x70] sm:$0xf]
        %v229 = vld [vmem:[%s196 + $0x74] sm:$0xf]
        %v230 = vld [vmem:[%s196 + $0x78] sm:$0xf]
        %v231 = vld [vmem:[%s196 + $0x7c] sm:$0xf]
        %v232 = vld [vmem:[%s196 + $0x80] sm:$0xf]
        %v233 = vld [vmem:[%s196 + $0x84] sm:$0xf]
        %v234 = vld [vmem:[%s196 + $0x88] sm:$0xf]
        %v235 = vld [vmem:[%s196 + $0x8c] sm:$0xf]
        %v236 = vld [vmem:[%s196 + $0x90] sm:$0xf]
        %v237 = vld [vmem:[%s196 + $0x94] sm:$0xf]
        %v238 = vld [vmem:[%s196 + $0x98] sm:$0xf]
        %v239 = vld [vmem:[%s196 + $0x9c] sm:$0xf]
        %v240 = vld [vmem:[%s196 + $0xa0] sm:$0xf]
        %v241 = vld [vmem:[%s196 + $0xa4] sm:$0xf]
        %v242 = vld [vmem:[%s196 + $0xa8] sm:$0xf]
        %v243 = vld [vmem:[%s196 + $0xac] sm:$0xf]
        %v244 = vld [vmem:[%s196 + $0xb0] sm:$0xf]
        %v245 = vld [vmem:[%s196 + $0xb4] sm:$0xf]
        %v246 = vld [vmem:[%s196 + $0xb8] sm:$0xf]
        %v247 = vld [vmem:[%s196 + $0xbc] sm:$0xf]
        %v248 = vld [vmem:[%s196 + $0xc0] sm:$0xf]
        %v249 = vld [vmem:[%s196 + $0xc4] sm:$0xf]
        %v250 = vld [vmem:[%s196 + $0xc8] sm:$0xf]
        %v251 = vld [vmem:[%s196 + $0xcc] sm:$0xf]
        %v252 = vld [vmem:[%s196 + $0xd0] sm:$0xf]
        %v253 = vld [vmem:[%s196 + $0xd4] sm:$0xf]
        %v254 = vld [vmem:[%s196 + $0xd8] sm:$0xf]
        %v255 = vld [vmem:[%s196 + $0xdc] sm:$0xf]
        %v256 = vld [vmem:[%s196 + $0xe0] sm:$0xf]
        %v257 = vld [vmem:[%s196 + $0xe4] sm:$0xf]
        %v258 = vld [vmem:[%s196 + $0xe8] sm:$0xf]
        %v259 = vld [vmem:[%s196 + $0xec] sm:$0xf]
        %v260 = vld [vmem:[%s196 + $0xf0] sm:$0xf]
        %v261 = vld [vmem:[%s196 + $0xf4] sm:$0xf]
        %v262 = vld [vmem:[%s196 + $0xf8] sm:$0xf]
        %v263 = vld [vmem:[%s196 + $0xfc] sm:$0xf]
        %v264 = vld [vmem:[%s1] sm:$0xf]
        %v329 = vunpack.c.l.b16 %v200
        %v330 = vunpack.c.l.b16 %v201
        %v331 = vunpack.c.l.b16 %v202
        %v332 = vunpack.c.l.b16 %v203
        %v333 = vunpack.c.l.b16 %v204
        %v334 = vunpack.c.l.b16 %v205
        %v335 = vunpack.c.l.b16 %v206
        %v336 = vunpack.c.l.b16 %v207
        %v337 = vunpack.c.l.b16 %v208
        %v338 = vunpack.c.l.b16 %v209
        %v339 = vunpack.c.l.b16 %v210
        %v340 = vunpack.c.l.b16 %v211
        %v341 = vunpack.c.l.b16 %v212
        %v342 = vunpack.c.l.b16 %v213
        %v343 = vunpack.c.l.b16 %v214
        %v344 = vunpack.c.l.b16 %v215
        %v345 = vunpack.c.l.b16 %v216
        %v346 = vunpack.c.l.b16 %v217
        %v347 = vunpack.c.l.b16 %v218
        %v348 = vunpack.c.l.b16 %v219
        %v349 = vunpack.c.l.b16 %v220
        %v350 = vunpack.c.l.b16 %v221
        %v351 = vunpack.c.l.b16 %v222
        %v352 = vunpack.c.l.b16 %v223
        %v353 = vunpack.c.l.b16 %v224
        %v354 = vunpack.c.l.b16 %v225
        %v355 = vunpack.c.l.b16 %v226
        %v356 = vunpack.c.l.b16 %v227
        %v357 = vunpack.c.l.b16 %v228
        %v358 = vunpack.c.l.b16 %v229
        %v359 = vunpack.c.l.b16 %v230
        %v360 = vunpack.c.l.b16 %v231
        %v361 = vunpack.c.l.b16 %v232
        %v362 = vunpack.c.l.b16 %v233
        %v363 = vunpack.c.l.b16 %v234
        %v364 = vunpack.c.l.b16 %v235
        %v365 = vunpack.c.l.b16 %v236
        %v366 = vunpack.c.l.b16 %v237
        %v367 = vunpack.c.l.b16 %v238
        %v368 = vunpack.c.l.b16 %v239
        %v369 = vunpack.c.l.b16 %v240
        %v370 = vunpack.c.l.b16 %v241
        %v371 = vunpack.c.l.b16 %v242
        %v372 = vunpack.c.l.b16 %v243
        %v373 = vunpack.c.l.b16 %v244
        %v374 = vunpack.c.l.b16 %v245
        %v375 = vunpack.c.l.b16 %v246
        %v376 = vunpack.c.l.b16 %v247
        %v377 = vunpack.c.l.b16 %v248
        %v378 = vunpack.c.l.b16 %v249
        %v379 = vunpack.c.l.b16 %v250
        %v380 = vunpack.c.l.b16 %v251
        %v381 = vunpack.c.l.b16 %v252
        %v382 = vunpack.c.l.b16 %v253
        %v383 = vunpack.c.l.b16 %v254
        %v384 = vunpack.c.l.b16 %v255
        %v385 = vunpack.c.l.b16 %v256
        %v386 = vunpack.c.l.b16 %v257
        %v387 = vunpack.c.l.b16 %v258
        %v388 = vunpack.c.l.b16 %v259
        %v389 = vunpack.c.l.b16 %v260
        %v390 = vunpack.c.l.b16 %v261
        %v391 = vunpack.c.l.b16 %v262
        %v392 = vunpack.c.l.b16 %v263
        %v393 = vpack.c.b16 %v330, %v329
        %v394 = vpack.c.b16 %v332, %v331
        %v395 = vpack.c.b16 %v334, %v333
        %v396 = vpack.c.b16 %v336, %v335
        %v397 = vpack.c.b16 %v338, %v337
        %v398 = vpack.c.b16 %v340, %v339
        %v399 = vpack.c.b16 %v342, %v341
        %v400 = vpack.c.b16 %v344, %v343
        %v401 = vpack.c.b16 %v346, %v345
        %v402 = vpack.c.b16 %v348, %v347
        %v403 = vpack.c.b16 %v350, %v349
        %v404 = vpack.c.b16 %v352, %v351
        %v405 = vpack.c.b16 %v354, %v353
        %v406 = vpack.c.b16 %v356, %v355
        %v407 = vpack.c.b16 %v358, %v357
        %v408 = vpack.c.b16 %v360, %v359
        %v409 = vpack.c.b16 %v362, %v361
        %v410 = vpack.c.b16 %v364, %v363
        %v411 = vpack.c.b16 %v366, %v365
        %v412 = vpack.c.b16 %v368, %v367
        %v413 = vpack.c.b16 %v370, %v369
        %v414 = vpack.c.b16 %v372, %v371
        %v415 = vpack.c.b16 %v374, %v373
        %v416 = vpack.c.b16 %v376, %v375
        %v417 = vpack.c.b16 %v378, %v377
        %v418 = vpack.c.b16 %v380, %v379
        %v419 = vpack.c.b16 %v382, %v381
        %v420 = vpack.c.b16 %v384, %v383
        %v421 = vpack.c.b16 %v386, %v385
        %v422 = vpack.c.b16 %v388, %v387
        %v423 = vpack.c.b16 %v390, %v389
        %v424 = vpack.c.b16 %v392, %v391
        %vm425 = vcmask 64512
        %v427 = vsel %vm425, %v393, 0
        %v430 = vsel %vm425, %v394, 0
        %v433 = vsel %vm425, %v395, 0
        %v436 = vsel %vm425, %v396, 0
        %v439 = vsel %vm425, %v397, 0
        %v442 = vsel %vm425, %v398, 0
        %v445 = vsel %vm425, %v399, 0
        %v448 = vsel %vm425, %v400, 0
        %v451 = vsel %vm425, %v401, 0
        %v454 = vsel %vm425, %v402, 0
        %v457 = vsel %vm425, %v403, 0
        %v460 = vsel %vm425, %v404, 0
        %v463 = vsel %vm425, %v405, 0
        %v466 = vsel %vm425, %v406, 0
        %v469 = vsel %vm425, %v407, 0
        %v472 = vsel %vm425, %v408, 0
        %v475 = vsel %vm425, %v409, 0
        %v478 = vsel %vm425, %v410, 0
        %v481 = vsel %vm425, %v411, 0
        %v484 = vsel %vm425, %v412, 0
        %v487 = vsel %vm425, %v413, 0
        %v490 = vsel %vm425, %v414, 0
        %v493 = vsel %vm425, %v415, 0
        %v496 = vsel %vm425, %v416, 0
        %v499 = vsel %vm425, %v417, 0
        %v502 = vsel %vm425, %v418, 0
        %v505 = vsel %vm425, %v419, 0
        %v508 = vsel %vm425, %v420, 0
        %v511 = vsel %vm425, %v421, 0
        %v514 = vsel %vm425, %v422, 0
        %v517 = vsel %vm425, %v423, 0
        %v520 = vsel %vm425, %v424, 0
        %vm522 = vcmask 1043456
        %v524 = vsel %vm522, %v264, 0
        %526 = vmatprep.subr.bf16.mxu0 0
        %527 = vmatpush1.bf16.msra.mxu0 0
        %528 = vmatprep.subr.bf16.mxu0 0
        %529 = vmatpush1.bf16.msra.mxu0 0
        %530 = vmatprep.subr.bf16.mxu0 0
        %531 = vmatpush1.bf16.msra.mxu0 0
        %532 = vmatprep.subr.bf16.mxu0 0
        %533 = vmatpush1.bf16.msra.mxu0 0
        %534 = vmatprep.subr.bf16.mxu0 0
        %535 = vmatpush1.bf16.msra.mxu0 0
        %536 = vmatprep.subr.bf16.mxu0 0
        %537 = vmatpush1.bf16.msra.mxu0 0
        %538 = vmatprep.subr.bf16.mxu0 0
        %539 = vmatpush1.bf16.msra.mxu0 0
        %540 = vmatprep.subr.bf16.mxu0 0
        %541 = vmatpush1.bf16.msra.mxu0 %v524
        %542 = vmatprep.subr.bf16.mxu0 0
        %543 = vmatpush2.bf16.msra.mxu0 0
        %544 = vmatprep.subr.bf16.mxu0 0
        %545 = vmatpush2.bf16.msra.mxu0 0
        %546 = vmatprep.subr.bf16.mxu0 0
        %547 = vmatpush2.bf16.msra.mxu0 0
        %548 = vmatprep.subr.bf16.mxu0 0
        %549 = vmatpush2.bf16.msra.mxu0 0
        %550 = vmatprep.subr.bf16.mxu0 0
        %551 = vmatpush2.bf16.msra.mxu0 0
        %552 = vmatprep.subr.bf16.mxu0 0
        %553 = vmatpush2.bf16.msra.mxu0 0
        %554 = vmatprep.subr.bf16.mxu0 0
        %555 = vmatpush2.bf16.msra.mxu0 0
        %556 = vmatprep.subr.bf16.mxu0 0
        %557 = vmatpush2.bf16.msra.mxu0 0
        %558 = vmatprep.mubr.bf16.mxu0 0
        %559 = vmatmul.mubr.bf16.gmra.mxu0 %v427
        %v560 = vpop.f32.mrf.mxu0
        %v561 = vadd.f32 0.0, %v560
        %v562 = vpop.f32.mrf.mxu0
        %v563 = vpop.f32.mrf.mxu0
        %v564 = vadd.f32 0.0, %v563
        %v565 = vpop.f32.mrf.mxu0
        %566 = vmatprep.mubr.bf16.mxu0 0
        %567 = vmatmul.mubr.bf16.gmra.mxu0 %v430
        %v568 = vpop.f32.mrf.mxu0
        %v569 = vadd.f32 0.0, %v568
        %v570 = vpop.f32.mrf.mxu0
        %v571 = vpop.f32.mrf.mxu0
        %v572 = vadd.f32 0.0, %v571
        %v573 = vpop.f32.mrf.mxu0
        %574 = vmatprep.mubr.bf16.mxu0 0
        %575 = vmatmul.mubr.bf16.gmra.mxu0 %v433
        %v576 = vpop.f32.mrf.mxu0
        %v577 = vadd.f32 0.0, %v576
        %v578 = vpop.f32.mrf.mxu0
        %v579 = vpop.f32.mrf.mxu0
        %v580 = vadd.f32 0.0, %v579
        %v581 = vpop.f32.mrf.mxu0
        %582 = vmatprep.mubr.bf16.mxu0 0
        %583 = vmatmul.mubr.bf16.gmra.mxu0 %v436
        %v584 = vpop.f32.mrf.mxu0
        %v585 = vadd.f32 0.0, %v584
        %v586 = vpop.f32.mrf.mxu0
        %v587 = vpop.f32.mrf.mxu0
        %v588 = vadd.f32 0.0, %v587
        %v589 = vpop.f32.mrf.mxu0
        %590 = vmatprep.mubr.bf16.mxu0 0
        %591 = vmatmul.mubr.bf16.gmra.mxu0 %v439
        %v592 = vpop.f32.mrf.mxu0
        %v593 = vadd.f32 0.0, %v592
        %v594 = vpop.f32.mrf.mxu0
        %v595 = vpop.f32.mrf.mxu0
        %v596 = vadd.f32 0.0, %v595
        %v597 = vpop.f32.mrf.mxu0
        %598 = vmatprep.mubr.bf16.mxu0 0
        %599 = vmatmul.mubr.bf16.gmra.mxu0 %v442
        %v600 = vpop.f32.mrf.mxu0
        %v601 = vadd.f32 0.0, %v600
        %v602 = vpop.f32.mrf.mxu0
        %v603 = vpop.f32.mrf.mxu0
        %v604 = vadd.f32 0.0, %v603
        %v605 = vpop.f32.mrf.mxu0
        %606 = vmatprep.mubr.bf16.mxu0 0
        %607 = vmatmul.mubr.bf16.gmra.mxu0 %v445
        %v608 = vpop.f32.mrf.mxu0
        %v609 = vadd.f32 0.0, %v608
        %v610 = vpop.f32.mrf.mxu0
        %v611 = vpop.f32.mrf.mxu0
        %v612 = vadd.f32 0.0, %v611
        %v613 = vpop.f32.mrf.mxu0
        %614 = vmatprep.mubr.bf16.mxu0 0
        %615 = vmatmul.mubr.bf16.gmra.mxu0 %v448
        %v616 = vpop.f32.mrf.mxu0
        %v617 = vadd.f32 0.0, %v616
        %v618 = vpop.f32.mrf.mxu0
        %v619 = vpop.f32.mrf.mxu0
        %v620 = vadd.f32 0.0, %v619
        %v621 = vpop.f32.mrf.mxu0
        %622 = vmatprep.mubr.bf16.mxu0 0
        %623 = vmatmul.mubr.bf16.gmra.mxu0 %v451
        %v624 = vpop.f32.mrf.mxu0
        %v625 = vadd.f32 0.0, %v624
        %v626 = vpop.f32.mrf.mxu0
        %v627 = vpop.f32.mrf.mxu0
        %v628 = vadd.f32 0.0, %v627
        %v629 = vpop.f32.mrf.mxu0
        %630 = vmatprep.mubr.bf16.mxu0 0
        %631 = vmatmul.mubr.bf16.gmra.mxu0 %v454
        %v632 = vpop.f32.mrf.mxu0
        %v633 = vadd.f32 0.0, %v632
        %v634 = vpop.f32.mrf.mxu0
        %v635 = vpop.f32.mrf.mxu0
        %v636 = vadd.f32 0.0, %v635
        %v637 = vpop.f32.mrf.mxu0
        %638 = vmatprep.mubr.bf16.mxu0 0
        %639 = vmatmul.mubr.bf16.gmra.mxu0 %v457
        %v640 = vpop.f32.mrf.mxu0
        %v641 = vadd.f32 0.0, %v640
        %v642 = vpop.f32.mrf.mxu0
        %v643 = vpop.f32.mrf.mxu0
        %v644 = vadd.f32 0.0, %v643
        %v645 = vpop.f32.mrf.mxu0
        %646 = vmatprep.mubr.bf16.mxu0 0
        %647 = vmatmul.mubr.bf16.gmra.mxu0 %v460
        %v648 = vpop.f32.mrf.mxu0
        %v649 = vadd.f32 0.0, %v648
        %v650 = vpop.f32.mrf.mxu0
        %v651 = vpop.f32.mrf.mxu0
        %v652 = vadd.f32 0.0, %v651
        %v653 = vpop.f32.mrf.mxu0
        %654 = vmatprep.mubr.bf16.mxu0 0
        %655 = vmatmul.mubr.bf16.gmra.mxu0 %v463
        %v656 = vpop.f32.mrf.mxu0
        %v657 = vadd.f32 0.0, %v656
        %v658 = vpop.f32.mrf.mxu0
        %v659 = vpop.f32.mrf.mxu0
        %v660 = vadd.f32 0.0, %v659
        %v661 = vpop.f32.mrf.mxu0
        %662 = vmatprep.mubr.bf16.mxu0 0
        %663 = vmatmul.mubr.bf16.gmra.mxu0 %v466
        %v664 = vpop.f32.mrf.mxu0
        %v665 = vadd.f32 0.0, %v664
        %v666 = vpop.f32.mrf.mxu0
        %v667 = vpop.f32.mrf.mxu0
        %v668 = vadd.f32 0.0, %v667
        %v669 = vpop.f32.mrf.mxu0
        %670 = vmatprep.mubr.bf16.mxu0 0
        %671 = vmatmul.mubr.bf16.gmra.mxu0 %v469
        %v672 = vpop.f32.mrf.mxu0
        %v673 = vadd.f32 0.0, %v672
        %v674 = vpop.f32.mrf.mxu0
        %v675 = vpop.f32.mrf.mxu0
        %v676 = vadd.f32 0.0, %v675
        %v677 = vpop.f32.mrf.mxu0
        %678 = vmatprep.mubr.bf16.mxu0 0
        %679 = vmatmul.mubr.bf16.gmra.mxu0 %v472
        %v680 = vpop.f32.mrf.mxu0
        %v681 = vadd.f32 0.0, %v680
        %v682 = vpop.f32.mrf.mxu0
        %v683 = vpop.f32.mrf.mxu0
        %v684 = vadd.f32 0.0, %v683
        %v685 = vpop.f32.mrf.mxu0
        %686 = vmatprep.mubr.bf16.mxu0 0
        %687 = vmatmul.mubr.bf16.gmra.mxu0 %v475
        %v688 = vpop.f32.mrf.mxu0
        %v689 = vadd.f32 0.0, %v688
        %v690 = vpop.f32.mrf.mxu0
        %v691 = vpop.f32.mrf.mxu0
        %v692 = vadd.f32 0.0, %v691
        %v693 = vpop.f32.mrf.mxu0
        %694 = vmatprep.mubr.bf16.mxu0 0
        %695 = vmatmul.mubr.bf16.gmra.mxu0 %v478
        %v696 = vpop.f32.mrf.mxu0
        %v697 = vadd.f32 0.0, %v696
        %v698 = vpop.f32.mrf.mxu0
        %v699 = vpop.f32.mrf.mxu0
        %v700 = vadd.f32 0.0, %v699
        %v701 = vpop.f32.mrf.mxu0
        %702 = vmatprep.mubr.bf16.mxu0 0
        %703 = vmatmul.mubr.bf16.gmra.mxu0 %v481
        %v704 = vpop.f32.mrf.mxu0
        %v705 = vadd.f32 0.0, %v704
        %v706 = vpop.f32.mrf.mxu0
        %v707 = vpop.f32.mrf.mxu0
        %v708 = vadd.f32 0.0, %v707
        %v709 = vpop.f32.mrf.mxu0
        %710 = vmatprep.mubr.bf16.mxu0 0
        %711 = vmatmul.mubr.bf16.gmra.mxu0 %v484
        %v712 = vpop.f32.mrf.mxu0
        %v713 = vadd.f32 0.0, %v712
        %v714 = vpop.f32.mrf.mxu0
        %v715 = vpop.f32.mrf.mxu0
        %v716 = vadd.f32 0.0, %v715
        %v717 = vpop.f32.mrf.mxu0
        %718 = vmatprep.mubr.bf16.mxu0 0
        %719 = vmatmul.mubr.bf16.gmra.mxu0 %v487
        %v720 = vpop.f32.mrf.mxu0
        %v721 = vadd.f32 0.0, %v720
        %v722 = vpop.f32.mrf.mxu0
        %v723 = vpop.f32.mrf.mxu0
        %v724 = vadd.f32 0.0, %v723
        %v725 = vpop.f32.mrf.mxu0
        %726 = vmatprep.mubr.bf16.mxu0 0
        %727 = vmatmul.mubr.bf16.gmra.mxu0 %v490
        %v728 = vpop.f32.mrf.mxu0
        %v729 = vadd.f32 0.0, %v728
        %v730 = vpop.f32.mrf.mxu0
        %v731 = vpop.f32.mrf.mxu0
        %v732 = vadd.f32 0.0, %v731
        %v733 = vpop.f32.mrf.mxu0
        %734 = vmatprep.mubr.bf16.mxu0 0
        %735 = vmatmul.mubr.bf16.gmra.mxu0 %v493
        %v736 = vpop.f32.mrf.mxu0
        %v737 = vadd.f32 0.0, %v736
        %v738 = vpop.f32.mrf.mxu0
        %v739 = vpop.f32.mrf.mxu0
        %v740 = vadd.f32 0.0, %v739
        %v741 = vpop.f32.mrf.mxu0
        %742 = vmatprep.mubr.bf16.mxu0 0
        %743 = vmatmul.mubr.bf16.gmra.mxu0 %v496
        %v744 = vpop.f32.mrf.mxu0
        %v745 = vadd.f32 0.0, %v744
        %v746 = vpop.f32.mrf.mxu0
        %v747 = vpop.f32.mrf.mxu0
        %v748 = vadd.f32 0.0, %v747
        %v749 = vpop.f32.mrf.mxu0
        %750 = vmatprep.mubr.bf16.mxu0 0
        %751 = vmatmul.mubr.bf16.gmra.mxu0 %v499
        %v752 = vpop.f32.mrf.mxu0
        %v753 = vadd.f32 0.0, %v752
        %v754 = vpop.f32.mrf.mxu0
        %v755 = vpop.f32.mrf.mxu0
        %v756 = vadd.f32 0.0, %v755
        %v757 = vpop.f32.mrf.mxu0
        %758 = vmatprep.mubr.bf16.mxu0 0
        %759 = vmatmul.mubr.bf16.gmra.mxu0 %v502
        %v760 = vpop.f32.mrf.mxu0
        %v761 = vadd.f32 0.0, %v760
        %v762 = vpop.f32.mrf.mxu0
        %v763 = vpop.f32.mrf.mxu0
        %v764 = vadd.f32 0.0, %v763
        %v765 = vpop.f32.mrf.mxu0
        %766 = vmatprep.mubr.bf16.mxu0 0
        %767 = vmatmul.mubr.bf16.gmra.mxu0 %v505
        %v768 = vpop.f32.mrf.mxu0
        %v769 = vadd.f32 0.0, %v768
        %v770 = vpop.f32.mrf.mxu0
        %v771 = vpop.f32.mrf.mxu0
        %v772 = vadd.f32 0.0, %v771
        %v773 = vpop.f32.mrf.mxu0
        %774 = vmatprep.mubr.bf16.mxu0 0
        %775 = vmatmul.mubr.bf16.gmra.mxu0 %v508
        %v776 = vpop.f32.mrf.mxu0
        %v777 = vadd.f32 0.0, %v776
        %v778 = vpop.f32.mrf.mxu0
        %v779 = vpop.f32.mrf.mxu0
        %v780 = vadd.f32 0.0, %v779
        %v781 = vpop.f32.mrf.mxu0
        %782 = vmatprep.mubr.bf16.mxu0 0
        %783 = vmatmul.mubr.bf16.gmra.mxu0 %v511
        %v784 = vpop.f32.mrf.mxu0
        %v785 = vadd.f32 0.0, %v784
        %v786 = vpop.f32.mrf.mxu0
        %v787 = vpop.f32.mrf.mxu0
        %v788 = vadd.f32 0.0, %v787
        %v789 = vpop.f32.mrf.mxu0
        %790 = vmatprep.mubr.bf16.mxu0 0
        %791 = vmatmul.mubr.bf16.gmra.mxu0 %v514
        %v792 = vpop.f32.mrf.mxu0
        %v793 = vadd.f32 0.0, %v792
        %v794 = vpop.f32.mrf.mxu0
        %v795 = vpop.f32.mrf.mxu0
        %v796 = vadd.f32 0.0, %v795
        %v797 = vpop.f32.mrf.mxu0
        %798 = vmatprep.mubr.bf16.mxu0 0
        %799 = vmatmul.mubr.bf16.gmra.mxu0 %v517
        %v800 = vpop.f32.mrf.mxu0
        %v801 = vadd.f32 0.0, %v800
        %v802 = vpop.f32.mrf.mxu0
        %v803 = vpop.f32.mrf.mxu0
        %v804 = vadd.f32 0.0, %v803
        %v805 = vpop.f32.mrf.mxu0
        %806 = vmatprep.mubr.bf16.mxu0 0
        %807 = vmatmul.mubr.bf16.gmra.mxu0 %v520
        %v808 = vpop.f32.mrf.mxu0
        %v809 = vadd.f32 0.0, %v808
        %v810 = vpop.f32.mrf.mxu0
        %v811 = vpop.f32.mrf.mxu0
        %v812 = vadd.f32 0.0, %v811
        %v813 = vpop.f32.mrf.mxu0
        %814 = vdwg.mxu0
        %v815 = vmax.f32 %v561, 0.0
        %v816 = vmax.f32 %v564, 0.0
        %v817 = vmax.f32 %v569, 0.0
        %v818 = vmax.f32 %v572, 0.0
        %v819 = vmax.f32 %v577, 0.0
        %v820 = vmax.f32 %v580, 0.0
        %v821 = vmax.f32 %v585, 0.0
        %v822 = vmax.f32 %v588, 0.0
        %v823 = vmax.f32 %v593, 0.0
        %v824 = vmax.f32 %v596, 0.0
        %v825 = vmax.f32 %v601, 0.0
        %v826 = vmax.f32 %v604, 0.0
        %v827 = vmax.f32 %v609, 0.0
        %v828 = vmax.f32 %v612, 0.0
        %v829 = vmax.f32 %v617, 0.0
        %v830 = vmax.f32 %v620, 0.0
        %v831 = vmax.f32 %v625, 0.0
        %v832 = vmax.f32 %v628, 0.0
        %v833 = vmax.f32 %v633, 0.0
        %v834 = vmax.f32 %v636, 0.0
        %v835 = vmax.f32 %v641, 0.0
        %v836 = vmax.f32 %v644, 0.0
        %v837 = vmax.f32 %v649, 0.0
        %v838 = vmax.f32 %v652, 0.0
        %v839 = vmax.f32 %v657, 0.0
        %v840 = vmax.f32 %v660, 0.0
        %v841 = vmax.f32 %v665, 0.0
        %v842 = vmax.f32 %v668, 0.0
        %v843 = vmax.f32 %v673, 0.0
        %v844 = vmax.f32 %v676, 0.0
        %v845 = vmax.f32 %v681, 0.0
        %v846 = vmax.f32 %v684, 0.0
        %v847 = vmax.f32 %v689, 0.0
        %v848 = vmax.f32 %v692, 0.0
        %v849 = vmax.f32 %v697, 0.0
        %v850 = vmax.f32 %v700, 0.0
        %v851 = vmax.f32 %v705, 0.0
        %v852 = vmax.f32 %v708, 0.0
        %v853 = vmax.f32 %v713, 0.0
        %v854 = vmax.f32 %v716, 0.0
        %v855 = vmax.f32 %v721, 0.0
        %v856 = vmax.f32 %v724, 0.0
        %v857 = vmax.f32 %v729, 0.0
        %v858 = vmax.f32 %v732, 0.0
        %v859 = vmax.f32 %v737, 0.0
        %v860 = vmax.f32 %v740, 0.0
        %v861 = vmax.f32 %v745, 0.0
        %v862 = vmax.f32 %v748, 0.0
        %v863 = vmax.f32 %v753, 0.0
        %v864 = vmax.f32 %v756, 0.0
        %v865 = vmax.f32 %v761, 0.0
        %v866 = vmax.f32 %v764, 0.0
        %v867 = vmax.f32 %v769, 0.0
        %v868 = vmax.f32 %v772, 0.0
        %v869 = vmax.f32 %v777, 0.0
        %v870 = vmax.f32 %v780, 0.0
        %v871 = vmax.f32 %v785, 0.0
        %v872 = vmax.f32 %v788, 0.0
        %v873 = vmax.f32 %v793, 0.0
        %v874 = vmax.f32 %v796, 0.0
        %v875 = vmax.f32 %v801, 0.0
        %v876 = vmax.f32 %v804, 0.0
        %v877 = vmax.f32 %v809, 0.0
        %v878 = vmax.f32 %v812, 0.0
        %v879 = vpack.c.bf16 %v816, %v815
        %v880 = vpack.c.bf16 %v818, %v817
        %v881 = vpack.c.bf16 %v820, %v819
        %v882 = vpack.c.bf16 %v822, %v821
        %v883 = vpack.c.bf16 %v824, %v823
        %v884 = vpack.c.bf16 %v826, %v825
        %v885 = vpack.c.bf16 %v828, %v827
        %v886 = vpack.c.bf16 %v830, %v829
        %v887 = vpack.c.bf16 %v832, %v831
        %v888 = vpack.c.bf16 %v834, %v833
        %v889 = vpack.c.bf16 %v836, %v835
        %v890 = vpack.c.bf16 %v838, %v837
        %v891 = vpack.c.bf16 %v840, %v839
        %v892 = vpack.c.bf16 %v842, %v841
        %v893 = vpack.c.bf16 %v844, %v843
        %v894 = vpack.c.bf16 %v846, %v845
        %v895 = vpack.c.bf16 %v848, %v847
        %v896 = vpack.c.bf16 %v850, %v849
        %v897 = vpack.c.bf16 %v852, %v851
        %v898 = vpack.c.bf16 %v854, %v853
        %v899 = vpack.c.bf16 %v856, %v855
        %v900 = vpack.c.bf16 %v858, %v857
        %v901 = vpack.c.bf16 %v860, %v859
        %v902 = vpack.c.bf16 %v862, %v861
        %v903 = vpack.c.bf16 %v864, %v863
        %v904 = vpack.c.bf16 %v866, %v865
        %v905 = vpack.c.bf16 %v868, %v867
        %v906 = vpack.c.bf16 %v870, %v869
        %v907 = vpack.c.bf16 %v872, %v871
        %v908 = vpack.c.bf16 %v874, %v873
        %v909 = vpack.c.bf16 %v876, %v875
        %v910 = vpack.c.bf16 %v878, %v877
        %v911 = vld [vmem:[%s2] sm:$0xf]
        %v912 = vld [vmem:[%s2 + $0x4] sm:$0xf]
        %v913 = vld [vmem:[%s2 + $0x8] sm:$0xf]
        %v914 = vld [vmem:[%s2 + $0xc] sm:$0xf]
        %v915 = vld [vmem:[%s3] sm:$0x1]
        %v917 = vlaneseq
        %v918 = vshrl.u32 %v917, 7
        %v919 = vsub.s32 0, %v918
        %v920 = vrot.slane %v915, %v919
        %v926 = vunpack.c.l.b16 %v911
        %v927 = vunpack.c.l.b16 %v912
        %v928 = vunpack.c.l.b16 %v913
        %v929 = vunpack.c.l.b16 %v914
        %v930 = vpack.c.b16 %v927, %v926
        %v931 = vpack.c.b16 %v929, %v928
        %vm934 = vcmask 261120
        %v936 = vsel %vm934, %v879, 0
        %v939 = vsel %vm934, %v880, 0
        %v942 = vsel %vm934, %v881, 0
        %v945 = vsel %vm934, %v882, 0
        %v948 = vsel %vm934, %v883, 0
        %v951 = vsel %vm934, %v884, 0
        %v954 = vsel %vm934, %v885, 0
        %v957 = vsel %vm934, %v886, 0
        %v960 = vsel %vm934, %v887, 0
        %v963 = vsel %vm934, %v888, 0
        %v966 = vsel %vm934, %v889, 0
        %v969 = vsel %vm934, %v890, 0
        %v972 = vsel %vm934, %v891, 0
        %v975 = vsel %vm934, %v892, 0
        %v978 = vsel %vm934, %v893, 0
        %v981 = vsel %vm934, %v894, 0
        %v984 = vsel %vm934, %v895, 0
        %v987 = vsel %vm934, %v896, 0
        %v990 = vsel %vm934, %v897, 0
        %v993 = vsel %vm934, %v898, 0
        %v996 = vsel %vm934, %v899, 0
        %v999 = vsel %vm934, %v900, 0
        %v1002 = vsel %vm934, %v901, 0
        %v1005 = vsel %vm934, %v902, 0
        %v1008 = vsel %vm934, %v903, 0
        %v1011 = vsel %vm934, %v904, 0
        %v1014 = vsel %vm934, %v905, 0
        %v1017 = vsel %vm934, %v906, 0
        %v1020 = vsel %vm934, %v907, 0
        %v1023 = vsel %vm934, %v908, 0
        %v1026 = vsel %vm934, %v909, 0
        %v1029 = vsel %vm934, %v910, 0
        %1031 = vmatprep.subr.bf16.mxu0 0
        %1032 = vmatpush1.bf16.msra.mxu0 0
        %1033 = vmatprep.subr.bf16.mxu0 0
        %1034 = vmatpush1.bf16.msra.mxu0 0
        %1035 = vmatprep.subr.bf16.mxu0 0
        %1036 = vmatpush1.bf16.msra.mxu0 0
        %1037 = vmatprep.subr.bf16.mxu0 0
        %1038 = vmatpush1.bf16.msra.mxu0 0
        %1039 = vmatprep.subr.bf16.mxu0 0
        %1040 = vmatpush1.bf16.msra.mxu0 0
        %1041 = vmatprep.subr.bf16.mxu0 0
        %1042 = vmatpush1.bf16.msra.mxu0 0
        %1043 = vmatprep.subr.bf16.mxu0 0
        %1044 = vmatpush1.bf16.msra.mxu0 %v931
        %1045 = vmatprep.subr.bf16.mxu0 0
        %1046 = vmatpush1.bf16.msra.mxu0 %v930
        %1047 = vmatprep.subr.bf16.mxu0 0
        %1048 = vmatpush2.bf16.msra.mxu0 0
        %1049 = vmatprep.subr.bf16.mxu0 0
        %1050 = vmatpush2.bf16.msra.mxu0 0
        %1051 = vmatprep.subr.bf16.mxu0 0
        %1052 = vmatpush2.bf16.msra.mxu0 0
        %1053 = vmatprep.subr.bf16.mxu0 0
        %1054 = vmatpush2.bf16.msra.mxu0 0
        %1055 = vmatprep.subr.bf16.mxu0 0
        %1056 = vmatpush2.bf16.msra.mxu0 0
        %1057 = vmatprep.subr.bf16.mxu0 0
        %1058 = vmatpush2.bf16.msra.mxu0 0
        %1059 = vmatprep.subr.bf16.mxu0 0
        %1060 = vmatpush2.bf16.msra.mxu0 0
        %1061 = vmatprep.subr.bf16.mxu0 0
        %1062 = vmatpush2.bf16.msra.mxu0 0
        %1063 = vmatprep.mubr.bf16.mxu0 0
        %1064 = vmatmul.mubr.bf16.gmra.mxu0 %v936
        %v1065 = vpop.f32.mrf.mxu0
        %v1066 = vadd.f32 %v920, %v1065
        %v1067 = vpop.f32.mrf.mxu0
        %v1068 = vpop.f32.mrf.mxu0
        %v1069 = vadd.f32 %v920, %v1068
        %v1070 = vpop.f32.mrf.mxu0
        %1071 = vmatprep.mubr.bf16.mxu0 0
        %1072 = vmatmul.mubr.bf16.gmra.mxu0 %v939
        %v1073 = vpop.f32.mrf.mxu0
        %v1074 = vadd.f32 %v920, %v1073
        %v1075 = vpop.f32.mrf.mxu0
        %v1076 = vpop.f32.mrf.mxu0
        %v1077 = vadd.f32 %v920, %v1076
        %v1078 = vpop.f32.mrf.mxu0
        %1079 = vmatprep.mubr.bf16.mxu0 0
        %1080 = vmatmul.mubr.bf16.gmra.mxu0 %v942
        %v1081 = vpop.f32.mrf.mxu0
        %v1082 = vadd.f32 %v920, %v1081
        %v1083 = vpop.f32.mrf.mxu0
        %v1084 = vpop.f32.mrf.mxu0
        %v1085 = vadd.f32 %v920, %v1084
        %v1086 = vpop.f32.mrf.mxu0
        %1087 = vmatprep.mubr.bf16.mxu0 0
        %1088 = vmatmul.mubr.bf16.gmra.mxu0 %v945
        %v1089 = vpop.f32.mrf.mxu0
        %v1090 = vadd.f32 %v920, %v1089
        %v1091 = vpop.f32.mrf.mxu0
        %v1092 = vpop.f32.mrf.mxu0
        %v1093 = vadd.f32 %v920, %v1092
        %v1094 = vpop.f32.mrf.mxu0
        %1095 = vmatprep.mubr.bf16.mxu0 0
        %1096 = vmatmul.mubr.bf16.gmra.mxu0 %v948
        %v1097 = vpop.f32.mrf.mxu0
        %v1098 = vadd.f32 %v920, %v1097
        %v1099 = vpop.f32.mrf.mxu0
        %v1100 = vpop.f32.mrf.mxu0
        %v1101 = vadd.f32 %v920, %v1100
        %v1102 = vpop.f32.mrf.mxu0
        %1103 = vmatprep.mubr.bf16.mxu0 0
        %1104 = vmatmul.mubr.bf16.gmra.mxu0 %v951
        %v1105 = vpop.f32.mrf.mxu0
        %v1106 = vadd.f32 %v920, %v1105
        %v1107 = vpop.f32.mrf.mxu0
        %v1108 = vpop.f32.mrf.mxu0
        %v1109 = vadd.f32 %v920, %v1108
        %v1110 = vpop.f32.mrf.mxu0
        %1111 = vmatprep.mubr.bf16.mxu0 0
        %1112 = vmatmul.mubr.bf16.gmra.mxu0 %v954
        %v1113 = vpop.f32.mrf.mxu0
        %v1114 = vadd.f32 %v920, %v1113
        %v1115 = vpop.f32.mrf.mxu0
        %v1116 = vpop.f32.mrf.mxu0
        %v1117 = vadd.f32 %v920, %v1116
        %v1118 = vpop.f32.mrf.mxu0
        %1119 = vmatprep.mubr.bf16.mxu0 0
        %1120 = vmatmul.mubr.bf16.gmra.mxu0 %v957
        %v1121 = vpop.f32.mrf.mxu0
        %v1122 = vadd.f32 %v920, %v1121
        %v1123 = vpop.f32.mrf.mxu0
        %v1124 = vpop.f32.mrf.mxu0
        %v1125 = vadd.f32 %v920, %v1124
        %v1126 = vpop.f32.mrf.mxu0
        %1127 = vmatprep.mubr.bf16.mxu0 0
        %1128 = vmatmul.mubr.bf16.gmra.mxu0 %v960
        %v1129 = vpop.f32.mrf.mxu0
        %v1130 = vadd.f32 %v920, %v1129
        %v1131 = vpop.f32.mrf.mxu0
        %v1132 = vpop.f32.mrf.mxu0
        %v1133 = vadd.f32 %v920, %v1132
        %v1134 = vpop.f32.mrf.mxu0
        %1135 = vmatprep.mubr.bf16.mxu0 0
        %1136 = vmatmul.mubr.bf16.gmra.mxu0 %v963
        %v1137 = vpop.f32.mrf.mxu0
        %v1138 = vadd.f32 %v920, %v1137
        %v1139 = vpop.f32.mrf.mxu0
        %v1140 = vpop.f32.mrf.mxu0
        %v1141 = vadd.f32 %v920, %v1140
        %v1142 = vpop.f32.mrf.mxu0
        %1143 = vmatprep.mubr.bf16.mxu0 0
        %1144 = vmatmul.mubr.bf16.gmra.mxu0 %v966
        %v1145 = vpop.f32.mrf.mxu0
        %v1146 = vadd.f32 %v920, %v1145
        %v1147 = vpop.f32.mrf.mxu0
        %v1148 = vpop.f32.mrf.mxu0
        %v1149 = vadd.f32 %v920, %v1148
        %v1150 = vpop.f32.mrf.mxu0
        %1151 = vmatprep.mubr.bf16.mxu0 0
        %1152 = vmatmul.mubr.bf16.gmra.mxu0 %v969
        %v1153 = vpop.f32.mrf.mxu0
        %v1154 = vadd.f32 %v920, %v1153
        %v1155 = vpop.f32.mrf.mxu0
        %v1156 = vpop.f32.mrf.mxu0
        %v1157 = vadd.f32 %v920, %v1156
        %v1158 = vpop.f32.mrf.mxu0
        %1159 = vmatprep.mubr.bf16.mxu0 0
        %1160 = vmatmul.mubr.bf16.gmra.mxu0 %v972
        %v1161 = vpop.f32.mrf.mxu0
        %v1162 = vadd.f32 %v920, %v1161
        %v1163 = vpop.f32.mrf.mxu0
        %v1164 = vpop.f32.mrf.mxu0
        %v1165 = vadd.f32 %v920, %v1164
        %v1166 = vpop.f32.mrf.mxu0
        %1167 = vmatprep.mubr.bf16.mxu0 0
        %1168 = vmatmul.mubr.bf16.gmra.mxu0 %v975
        %v1169 = vpop.f32.mrf.mxu0
        %v1170 = vadd.f32 %v920, %v1169
        %v1171 = vpop.f32.mrf.mxu0
        %v1172 = vpop.f32.mrf.mxu0
        %v1173 = vadd.f32 %v920, %v1172
        %v1174 = vpop.f32.mrf.mxu0
        %1175 = vmatprep.mubr.bf16.mxu0 0
        %1176 = vmatmul.mubr.bf16.gmra.mxu0 %v978
        %v1177 = vpop.f32.mrf.mxu0
        %v1178 = vadd.f32 %v920, %v1177
        %v1179 = vpop.f32.mrf.mxu0
        %v1180 = vpop.f32.mrf.mxu0
        %v1181 = vadd.f32 %v920, %v1180
        %v1182 = vpop.f32.mrf.mxu0
        %1183 = vmatprep.mubr.bf16.mxu0 0
        %1184 = vmatmul.mubr.bf16.gmra.mxu0 %v981
        %v1185 = vpop.f32.mrf.mxu0
        %v1186 = vadd.f32 %v920, %v1185
        %v1187 = vpop.f32.mrf.mxu0
        %v1188 = vpop.f32.mrf.mxu0
        %v1189 = vadd.f32 %v920, %v1188
        %v1190 = vpop.f32.mrf.mxu0
        %1191 = vmatprep.mubr.bf16.mxu0 0
        %1192 = vmatmul.mubr.bf16.gmra.mxu0 %v984
        %v1193 = vpop.f32.mrf.mxu0
        %v1194 = vadd.f32 %v920, %v1193
        %v1195 = vpop.f32.mrf.mxu0
        %v1196 = vpop.f32.mrf.mxu0
        %v1197 = vadd.f32 %v920, %v1196
        %v1198 = vpop.f32.mrf.mxu0
        %1199 = vmatprep.mubr.bf16.mxu0 0
        %1200 = vmatmul.mubr.bf16.gmra.mxu0 %v987
        %v1201 = vpop.f32.mrf.mxu0
        %v1202 = vadd.f32 %v920, %v1201
        %v1203 = vpop.f32.mrf.mxu0
        %v1204 = vpop.f32.mrf.mxu0
        %v1205 = vadd.f32 %v920, %v1204
        %v1206 = vpop.f32.mrf.mxu0
        %1207 = vmatprep.mubr.bf16.mxu0 0
        %1208 = vmatmul.mubr.bf16.gmra.mxu0 %v990
        %v1209 = vpop.f32.mrf.mxu0
        %v1210 = vadd.f32 %v920, %v1209
        %v1211 = vpop.f32.mrf.mxu0
        %v1212 = vpop.f32.mrf.mxu0
        %v1213 = vadd.f32 %v920, %v1212
        %v1214 = vpop.f32.mrf.mxu0
        %1215 = vmatprep.mubr.bf16.mxu0 0
        %1216 = vmatmul.mubr.bf16.gmra.mxu0 %v993
        %v1217 = vpop.f32.mrf.mxu0
        %v1218 = vadd.f32 %v920, %v1217
        %v1219 = vpop.f32.mrf.mxu0
        %v1220 = vpop.f32.mrf.mxu0
        %v1221 = vadd.f32 %v920, %v1220
        %v1222 = vpop.f32.mrf.mxu0
        %1223 = vmatprep.mubr.bf16.mxu0 0
        %1224 = vmatmul.mubr.bf16.gmra.mxu0 %v996
        %v1225 = vpop.f32.mrf.mxu0
        %v1226 = vadd.f32 %v920, %v1225
        %v1227 = vpop.f32.mrf.mxu0
        %v1228 = vpop.f32.mrf.mxu0
        %v1229 = vadd.f32 %v920, %v1228
        %v1230 = vpop.f32.mrf.mxu0
        %1231 = vmatprep.mubr.bf16.mxu0 0
        %1232 = vmatmul.mubr.bf16.gmra.mxu0 %v999
        %v1233 = vpop.f32.mrf.mxu0
        %v1234 = vadd.f32 %v920, %v1233
        %v1235 = vpop.f32.mrf.mxu0
        %v1236 = vpop.f32.mrf.mxu0
        %v1237 = vadd.f32 %v920, %v1236
        %v1238 = vpop.f32.mrf.mxu0
        %1239 = vmatprep.mubr.bf16.mxu0 0
        %1240 = vmatmul.mubr.bf16.gmra.mxu0 %v1002
        %v1241 = vpop.f32.mrf.mxu0
        %v1242 = vadd.f32 %v920, %v1241
        %v1243 = vpop.f32.mrf.mxu0
        %v1244 = vpop.f32.mrf.mxu0
        %v1245 = vadd.f32 %v920, %v1244
        %v1246 = vpop.f32.mrf.mxu0
        %1247 = vmatprep.mubr.bf16.mxu0 0
        %1248 = vmatmul.mubr.bf16.gmra.mxu0 %v1005
        %v1249 = vpop.f32.mrf.mxu0
        %v1250 = vadd.f32 %v920, %v1249
        %v1251 = vpop.f32.mrf.mxu0
        %v1252 = vpop.f32.mrf.mxu0
        %v1253 = vadd.f32 %v920, %v1252
        %v1254 = vpop.f32.mrf.mxu0
        %1255 = vmatprep.mubr.bf16.mxu0 0
        %1256 = vmatmul.mubr.bf16.gmra.mxu0 %v1008
        %v1257 = vpop.f32.mrf.mxu0
        %v1258 = vadd.f32 %v920, %v1257
        %v1259 = vpop.f32.mrf.mxu0
        %v1260 = vpop.f32.mrf.mxu0
        %v1261 = vadd.f32 %v920, %v1260
        %v1262 = vpop.f32.mrf.mxu0
        %1263 = vmatprep.mubr.bf16.mxu0 0
        %1264 = vmatmul.mubr.bf16.gmra.mxu0 %v1011
        %v1265 = vpop.f32.mrf.mxu0
        %v1266 = vadd.f32 %v920, %v1265
        %v1267 = vpop.f32.mrf.mxu0
        %v1268 = vpop.f32.mrf.mxu0
        %v1269 = vadd.f32 %v920, %v1268
        %v1270 = vpop.f32.mrf.mxu0
        %1271 = vmatprep.mubr.bf16.mxu0 0
        %1272 = vmatmul.mubr.bf16.gmra.mxu0 %v1014
        %v1273 = vpop.f32.mrf.mxu0
        %v1274 = vadd.f32 %v920, %v1273
        %v1275 = vpop.f32.mrf.mxu0
        %v1276 = vpop.f32.mrf.mxu0
        %v1277 = vadd.f32 %v920, %v1276
        %v1278 = vpop.f32.mrf.mxu0
        %1279 = vmatprep.mubr.bf16.mxu0 0
        %1280 = vmatmul.mubr.bf16.gmra.mxu0 %v1017
        %v1281 = vpop.f32.mrf.mxu0
        %v1282 = vadd.f32 %v920, %v1281
        %v1283 = vpop.f32.mrf.mxu0
        %v1284 = vpop.f32.mrf.mxu0
        %v1285 = vadd.f32 %v920, %v1284
        %v1286 = vpop.f32.mrf.mxu0
        %1287 = vmatprep.mubr.bf16.mxu0 0
        %1288 = vmatmul.mubr.bf16.gmra.mxu0 %v1020
        %v1289 = vpop.f32.mrf.mxu0
        %v1290 = vadd.f32 %v920, %v1289
        %v1291 = vpop.f32.mrf.mxu0
        %v1292 = vpop.f32.mrf.mxu0
        %v1293 = vadd.f32 %v920, %v1292
        %v1294 = vpop.f32.mrf.mxu0
        %1295 = vmatprep.mubr.bf16.mxu0 0
        %1296 = vmatmul.mubr.bf16.gmra.mxu0 %v1023
        %v1297 = vpop.f32.mrf.mxu0
        %v1298 = vadd.f32 %v920, %v1297
        %v1299 = vpop.f32.mrf.mxu0
        %v1300 = vpop.f32.mrf.mxu0
        %v1301 = vadd.f32 %v920, %v1300
        %v1302 = vpop.f32.mrf.mxu0
        %1303 = vmatprep.mubr.bf16.mxu0 0
        %1304 = vmatmul.mubr.bf16.gmra.mxu0 %v1026
        %v1305 = vpop.f32.mrf.mxu0
        %v1306 = vadd.f32 %v920, %v1305
        %v1307 = vpop.f32.mrf.mxu0
        %v1308 = vpop.f32.mrf.mxu0
        %v1309 = vadd.f32 %v920, %v1308
        %v1310 = vpop.f32.mrf.mxu0
        %1311 = vmatprep.mubr.bf16.mxu0 0
        %1312 = vmatmul.mubr.bf16.gmra.mxu0 %v1029
        %v1313 = vpop.f32.mrf.mxu0
        %v1314 = vadd.f32 %v920, %v1313
        %v1315 = vpop.f32.mrf.mxu0
        %v1316 = vpop.f32.mrf.mxu0
        %v1317 = vadd.f32 %v920, %v1316
        %v1318 = vpop.f32.mrf.mxu0
        %1319 = vdwg.mxu0
        %v1320 = vmax.f32 %v1066, 0.0
        %v1321 = vmax.f32 %v1069, 0.0
        %v1322 = vmax.f32 %v1074, 0.0
        %v1323 = vmax.f32 %v1077, 0.0
        %v1324 = vmax.f32 %v1082, 0.0
        %v1325 = vmax.f32 %v1085, 0.0
        %v1326 = vmax.f32 %v1090, 0.0
        %v1327 = vmax.f32 %v1093, 0.0
        %v1328 = vmax.f32 %v1098, 0.0
        %v1329 = vmax.f32 %v1101, 0.0
        %v1330 = vmax.f32 %v1106, 0.0
        %v1331 = vmax.f32 %v1109, 0.0
        %v1332 = vmax.f32 %v1114, 0.0
        %v1333 = vmax.f32 %v1117, 0.0
        %v1334 = vmax.f32 %v1122, 0.0
        %v1335 = vmax.f32 %v1125, 0.0
        %v1336 = vmax.f32 %v1130, 0.0
        %v1337 = vmax.f32 %v1133, 0.0
        %v1338 = vmax.f32 %v1138, 0.0
        %v1339 = vmax.f32 %v1141, 0.0
        %v1340 = vmax.f32 %v1146, 0.0
        %v1341 = vmax.f32 %v1149, 0.0
        %v1342 = vmax.f32 %v1154, 0.0
        %v1343 = vmax.f32 %v1157, 0.0
        %v1344 = vmax.f32 %v1162, 0.0
        %v1345 = vmax.f32 %v1165, 0.0
        %v1346 = vmax.f32 %v1170, 0.0
        %v1347 = vmax.f32 %v1173, 0.0
        %v1348 = vmax.f32 %v1178, 0.0
        %v1349 = vmax.f32 %v1181, 0.0
        %v1350 = vmax.f32 %v1186, 0.0
        %v1351 = vmax.f32 %v1189, 0.0
        %v1352 = vmax.f32 %v1194, 0.0
        %v1353 = vmax.f32 %v1197, 0.0
        %v1354 = vmax.f32 %v1202, 0.0
        %v1355 = vmax.f32 %v1205, 0.0
        %v1356 = vmax.f32 %v1210, 0.0
        %v1357 = vmax.f32 %v1213, 0.0
        %v1358 = vmax.f32 %v1218, 0.0
        %v1359 = vmax.f32 %v1221, 0.0
        %v1360 = vmax.f32 %v1226, 0.0
        %v1361 = vmax.f32 %v1229, 0.0
        %v1362 = vmax.f32 %v1234, 0.0
        %v1363 = vmax.f32 %v1237, 0.0
        %v1364 = vmax.f32 %v1242, 0.0
        %v1365 = vmax.f32 %v1245, 0.0
        %v1366 = vmax.f32 %v1250, 0.0
        %v1367 = vmax.f32 %v1253, 0.0
        %v1368 = vmax.f32 %v1258, 0.0
        %v1369 = vmax.f32 %v1261, 0.0
        %v1370 = vmax.f32 %v1266, 0.0
        %v1371 = vmax.f32 %v1269, 0.0
        %v1372 = vmax.f32 %v1274, 0.0
        %v1373 = vmax.f32 %v1277, 0.0
        %v1374 = vmax.f32 %v1282, 0.0
        %v1375 = vmax.f32 %v1285, 0.0
        %v1376 = vmax.f32 %v1290, 0.0
        %v1377 = vmax.f32 %v1293, 0.0
        %v1378 = vmax.f32 %v1298, 0.0
        %v1379 = vmax.f32 %v1301, 0.0
        %v1380 = vmax.f32 %v1306, 0.0
        %v1381 = vmax.f32 %v1309, 0.0
        %v1382 = vmax.f32 %v1314, 0.0
        %v1383 = vmax.f32 %v1317, 0.0
        %v1384 = vmax.f32 %v1320, %v1321
        %v1385 = vrot.slane %v1384, 4
        %v1386 = vmax.f32 %v1384, %v1385
        %v1387 = vrot.slane %v1386, 2
        %v1388 = vmax.f32 %v1386, %v1387
        %v1389 = vrot.slane %v1388, 1
        %v1390 = vmax.f32 %v1388, %v1389
        %v1391 = vmax.f32 %v1322, %v1323
        %v1392 = vrot.slane %v1391, 4
        %v1393 = vmax.f32 %v1391, %v1392
        %v1394 = vrot.slane %v1393, 2
        %v1395 = vmax.f32 %v1393, %v1394
        %v1396 = vrot.slane %v1395, 1
        %v1397 = vmax.f32 %v1395, %v1396
        %v1398 = vmax.f32 %v1324, %v1325
        %v1399 = vrot.slane %v1398, 4
        %v1400 = vmax.f32 %v1398, %v1399
        %v1401 = vrot.slane %v1400, 2
        %v1402 = vmax.f32 %v1400, %v1401
        %v1403 = vrot.slane %v1402, 1
        %v1404 = vmax.f32 %v1402, %v1403
        %v1405 = vmax.f32 %v1326, %v1327
        %v1406 = vrot.slane %v1405, 4
        %v1407 = vmax.f32 %v1405, %v1406
        %v1408 = vrot.slane %v1407, 2
        %v1409 = vmax.f32 %v1407, %v1408
        %v1410 = vrot.slane %v1409, 1
        %v1411 = vmax.f32 %v1409, %v1410
        %v1412 = vmax.f32 %v1328, %v1329
        %v1413 = vrot.slane %v1412, 4
        %v1414 = vmax.f32 %v1412, %v1413
        %v1415 = vrot.slane %v1414, 2
        %v1416 = vmax.f32 %v1414, %v1415
        %v1417 = vrot.slane %v1416, 1
        %v1418 = vmax.f32 %v1416, %v1417
        %v1419 = vmax.f32 %v1330, %v1331
        %v1420 = vrot.slane %v1419, 4
        %v1421 = vmax.f32 %v1419, %v1420
        %v1422 = vrot.slane %v1421, 2
        %v1423 = vmax.f32 %v1421, %v1422
        %v1424 = vrot.slane %v1423, 1
        %v1425 = vmax.f32 %v1423, %v1424
        %v1426 = vmax.f32 %v1332, %v1333
        %v1427 = vrot.slane %v1426, 4
        %v1428 = vmax.f32 %v1426, %v1427
        %v1429 = vrot.slane %v1428, 2
        %v1430 = vmax.f32 %v1428, %v1429
        %v1431 = vrot.slane %v1430, 1
        %v1432 = vmax.f32 %v1430, %v1431
        %v1433 = vmax.f32 %v1334, %v1335
        %v1434 = vrot.slane %v1433, 4
        %v1435 = vmax.f32 %v1433, %v1434
        %v1436 = vrot.slane %v1435, 2
        %v1437 = vmax.f32 %v1435, %v1436
        %v1438 = vrot.slane %v1437, 1
        %v1439 = vmax.f32 %v1437, %v1438
        %v1440 = vmax.f32 %v1336, %v1337
        %v1441 = vrot.slane %v1440, 4
        %v1442 = vmax.f32 %v1440, %v1441
        %v1443 = vrot.slane %v1442, 2
        %v1444 = vmax.f32 %v1442, %v1443
        %v1445 = vrot.slane %v1444, 1
        %v1446 = vmax.f32 %v1444, %v1445
        %v1447 = vmax.f32 %v1338, %v1339
        %v1448 = vrot.slane %v1447, 4
        %v1449 = vmax.f32 %v1447, %v1448
        %v1450 = vrot.slane %v1449, 2
        %v1451 = vmax.f32 %v1449, %v1450
        %v1452 = vrot.slane %v1451, 1
        %v1453 = vmax.f32 %v1451, %v1452
        %v1454 = vmax.f32 %v1340, %v1341
        %v1455 = vrot.slane %v1454, 4
        %v1456 = vmax.f32 %v1454, %v1455
        %v1457 = vrot.slane %v1456, 2
        %v1458 = vmax.f32 %v1456, %v1457
        %v1459 = vrot.slane %v1458, 1
        %v1460 = vmax.f32 %v1458, %v1459
        %v1461 = vmax.f32 %v1342, %v1343
        %v1462 = vrot.slane %v1461, 4
        %v1463 = vmax.f32 %v1461, %v1462
        %v1464 = vrot.slane %v1463, 2
        %v1465 = vmax.f32 %v1463, %v1464
        %v1466 = vrot.slane %v1465, 1
        %v1467 = vmax.f32 %v1465, %v1466
        %v1468 = vmax.f32 %v1344, %v1345
        %v1469 = vrot.slane %v1468, 4
        %v1470 = vmax.f32 %v1468, %v1469
        %v1471 = vrot.slane %v1470, 2
        %v1472 = vmax.f32 %v1470, %v1471
        %v1473 = vrot.slane %v1472, 1
        %v1474 = vmax.f32 %v1472, %v1473
        %v1475 = vmax.f32 %v1346, %v1347
        %v1476 = vrot.slane %v1475, 4
        %v1477 = vmax.f32 %v1475, %v1476
        %v1478 = vrot.slane %v1477, 2
        %v1479 = vmax.f32 %v1477, %v1478
        %v1480 = vrot.slane %v1479, 1
        %v1481 = vmax.f32 %v1479, %v1480
        %v1482 = vmax.f32 %v1348, %v1349
        %v1483 = vrot.slane %v1482, 4
        %v1484 = vmax.f32 %v1482, %v1483
        %v1485 = vrot.slane %v1484, 2
        %v1486 = vmax.f32 %v1484, %v1485
        %v1487 = vrot.slane %v1486, 1
        %v1488 = vmax.f32 %v1486, %v1487
        %v1489 = vmax.f32 %v1350, %v1351
        %v1490 = vrot.slane %v1489, 4
        %v1491 = vmax.f32 %v1489, %v1490
        %v1492 = vrot.slane %v1491, 2
        %v1493 = vmax.f32 %v1491, %v1492
        %v1494 = vrot.slane %v1493, 1
        %v1495 = vmax.f32 %v1493, %v1494
        %v1496 = vmax.f32 %v1352, %v1353
        %v1497 = vrot.slane %v1496, 4
        %v1498 = vmax.f32 %v1496, %v1497
        %v1499 = vrot.slane %v1498, 2
        %v1500 = vmax.f32 %v1498, %v1499
        %v1501 = vrot.slane %v1500, 1
        %v1502 = vmax.f32 %v1500, %v1501
        %v1503 = vmax.f32 %v1354, %v1355
        %v1504 = vrot.slane %v1503, 4
        %v1505 = vmax.f32 %v1503, %v1504
        %v1506 = vrot.slane %v1505, 2
        %v1507 = vmax.f32 %v1505, %v1506
        %v1508 = vrot.slane %v1507, 1
        %v1509 = vmax.f32 %v1507, %v1508
        %v1510 = vmax.f32 %v1356, %v1357
        %v1511 = vrot.slane %v1510, 4
        %v1512 = vmax.f32 %v1510, %v1511
        %v1513 = vrot.slane %v1512, 2
        %v1514 = vmax.f32 %v1512, %v1513
        %v1515 = vrot.slane %v1514, 1
        %v1516 = vmax.f32 %v1514, %v1515
        %v1517 = vmax.f32 %v1358, %v1359
        %v1518 = vrot.slane %v1517, 4
        %v1519 = vmax.f32 %v1517, %v1518
        %v1520 = vrot.slane %v1519, 2
        %v1521 = vmax.f32 %v1519, %v1520
        %v1522 = vrot.slane %v1521, 1
        %v1523 = vmax.f32 %v1521, %v1522
        %v1524 = vmax.f32 %v1360, %v1361
        %v1525 = vrot.slane %v1524, 4
        %v1526 = vmax.f32 %v1524, %v1525
        %v1527 = vrot.slane %v1526, 2
        %v1528 = vmax.f32 %v1526, %v1527
        %v1529 = vrot.slane %v1528, 1
        %v1530 = vmax.f32 %v1528, %v1529
        %v1531 = vmax.f32 %v1362, %v1363
        %v1532 = vrot.slane %v1531, 4
        %v1533 = vmax.f32 %v1531, %v1532
        %v1534 = vrot.slane %v1533, 2
        %v1535 = vmax.f32 %v1533, %v1534
        %v1536 = vrot.slane %v1535, 1
        %v1537 = vmax.f32 %v1535, %v1536
        %v1538 = vmax.f32 %v1364, %v1365
        %v1539 = vrot.slane %v1538, 4
        %v1540 = vmax.f32 %v1538, %v1539
        %v1541 = vrot.slane %v1540, 2
        %v1542 = vmax.f32 %v1540, %v1541
        %v1543 = vrot.slane %v1542, 1
        %v1544 = vmax.f32 %v1542, %v1543
        %v1545 = vmax.f32 %v1366, %v1367
        %v1546 = vrot.slane %v1545, 4
        %v1547 = vmax.f32 %v1545, %v1546
        %v1548 = vrot.slane %v1547, 2
        %v1549 = vmax.f32 %v1547, %v1548
        %v1550 = vrot.slane %v1549, 1
        %v1551 = vmax.f32 %v1549, %v1550
        %v1552 = vmax.f32 %v1368, %v1369
        %v1553 = vrot.slane %v1552, 4
        %v1554 = vmax.f32 %v1552, %v1553
        %v1555 = vrot.slane %v1554, 2
        %v1556 = vmax.f32 %v1554, %v1555
        %v1557 = vrot.slane %v1556, 1
        %v1558 = vmax.f32 %v1556, %v1557
        %v1559 = vmax.f32 %v1370, %v1371
        %v1560 = vrot.slane %v1559, 4
        %v1561 = vmax.f32 %v1559, %v1560
        %v1562 = vrot.slane %v1561, 2
        %v1563 = vmax.f32 %v1561, %v1562
        %v1564 = vrot.slane %v1563, 1
        %v1565 = vmax.f32 %v1563, %v1564
        %v1566 = vmax.f32 %v1372, %v1373
        %v1567 = vrot.slane %v1566, 4
        %v1568 = vmax.f32 %v1566, %v1567
        %v1569 = vrot.slane %v1568, 2
        %v1570 = vmax.f32 %v1568, %v1569
        %v1571 = vrot.slane %v1570, 1
        %v1572 = vmax.f32 %v1570, %v1571
        %v1573 = vmax.f32 %v1374, %v1375
        %v1574 = vrot.slane %v1573, 4
        %v1575 = vmax.f32 %v1573, %v1574
        %v1576 = vrot.slane %v1575, 2
        %v1577 = vmax.f32 %v1575, %v1576
        %v1578 = vrot.slane %v1577, 1
        %v1579 = vmax.f32 %v1577, %v1578
        %v1580 = vmax.f32 %v1376, %v1377
        %v1581 = vrot.slane %v1580, 4
        %v1582 = vmax.f32 %v1580, %v1581
        %v1583 = vrot.slane %v1582, 2
        %v1584 = vmax.f32 %v1582, %v1583
        %v1585 = vrot.slane %v1584, 1
        %v1586 = vmax.f32 %v1584, %v1585
        %v1587 = vmax.f32 %v1378, %v1379
        %v1588 = vrot.slane %v1587, 4
        %v1589 = vmax.f32 %v1587, %v1588
        %v1590 = vrot.slane %v1589, 2
        %v1591 = vmax.f32 %v1589, %v1590
        %v1592 = vrot.slane %v1591, 1
        %v1593 = vmax.f32 %v1591, %v1592
        %v1594 = vmax.f32 %v1380, %v1381
        %v1595 = vrot.slane %v1594, 4
        %v1596 = vmax.f32 %v1594, %v1595
        %v1597 = vrot.slane %v1596, 2
        %v1598 = vmax.f32 %v1596, %v1597
        %v1599 = vrot.slane %v1598, 1
        %v1600 = vmax.f32 %v1598, %v1599
        %v1601 = vmax.f32 %v1382, %v1383
        %v1602 = vrot.slane %v1601, 4
        %v1603 = vmax.f32 %v1601, %v1602
        %v1604 = vrot.slane %v1603, 2
        %v1605 = vmax.f32 %v1603, %v1604
        %v1606 = vrot.slane %v1605, 1
        %v1607 = vmax.f32 %v1605, %v1606
        %vm1640 = vcmask 1041409
        %v1641 = vsel %vm1640, %v1397, %v1390
        %vm1642 = vcmask 1042434
        %v1643 = vsel %vm1642, %v1404, %v1641
        %vm1644 = vcmask 1043459
        %v1645 = vsel %vm1644, %v1411, %v1643
        %vm1646 = vcmask 1044484
        %v1647 = vsel %vm1646, %v1418, %v1645
        %vm1648 = vcmask 1045509
        %v1649 = vsel %vm1648, %v1425, %v1647
        %vm1650 = vcmask 1046534
        %v1651 = vsel %vm1650, %v1432, %v1649
        %vm1652 = vcmask 1047559
        %v1653 = vsel %vm1652, %v1439, %v1651
        %v1654 = vsel %vm1640, %v1453, %v1446
        %v1655 = vsel %vm1642, %v1460, %v1654
        %v1656 = vsel %vm1644, %v1467, %v1655
        %v1657 = vsel %vm1646, %v1474, %v1656
        %v1658 = vsel %vm1648, %v1481, %v1657
        %v1659 = vsel %vm1650, %v1488, %v1658
        %v1660 = vsel %vm1652, %v1495, %v1659
        %v1661 = vsel %vm1640, %v1509, %v1502
        %v1662 = vsel %vm1642, %v1516, %v1661
        %v1663 = vsel %vm1644, %v1523, %v1662
        %v1664 = vsel %vm1646, %v1530, %v1663
        %v1665 = vsel %vm1648, %v1537, %v1664
        %v1666 = vsel %vm1650, %v1544, %v1665
        %v1667 = vsel %vm1652, %v1551, %v1666
        %v1668 = vsel %vm1640, %v1565, %v1558
        %v1669 = vsel %vm1642, %v1572, %v1668
        %v1670 = vsel %vm1644, %v1579, %v1669
        %v1671 = vsel %vm1646, %v1586, %v1670
        %v1672 = vsel %vm1648, %v1593, %v1671
        %v1673 = vsel %vm1650, %v1600, %v1672
        %v1674 = vsel %vm1652, %v1607, %v1673
        %1679 = vst [vmem:[%s191] sm:$0xff] %v1653
        %1680 = vst [vmem:[%s191 + $0x8] sm:$0xff] %v1660
        %1681 = vst [vmem:[%s191 + $0x10] sm:$0xff] %v1667
        %1682 = vst [vmem:[%s191 + $0x18] sm:$0xff] %v1674
        %s1683 = sand.u32 %s115, 1
        %s1684 = scalar_lea.sflag [#allocation3], %s1683
        %s1685 = sand.u32 %s115, 1
        %s1686 = smul.addr %s1685, 32
        %s1687 = scalar_lea.vmem [#allocation2], %s1686
        // Predicated region
        $region37: #{sa_module_forward.1} parent=35 // pred_check
          %p1688 = pneg %p125
        $region38: #{sa_module_forward.1} parent=35 // pred_check_branch
          %1690 = sbr.rel (%p1688) target = $region40
        $region39: #{sa_module_forward.1} parent=35 // pred_region
          %s1691 = smul.u32 4, %s18
          %s1693 = ssub.s32 512, 512
          %1694 = vsyncadd %s1684, %s1693
          %s1695 = smul.addr %s1691, 128
          %s1696 = scalar_lea.hbm %s4, %s1695
          %s1697 = sshll.u32 %s1687, 4
          %s1698 = int_to_ptr.vmem [resolvable:$true] %s1697
          %1703 = dma.vmem_to_hbm [thread:$0]  %s1698, 512, %s1696, %s1684, 128, 128, 8
        $region40: #{sa_module_forward.1} parent=35 // pred_fallthru
          _
      $region36: #{sa_module_forward.1} parent=5 // pred_fallthru
        _
      %p1704 = scmp.le.s32.totalorder 2, %s13
      // Predicated region
      $region41: #{sa_module_forward.1} parent=5 // pred_check
        %p1705 = pneg %p1704
      $region42: #{sa_module_forward.1} parent=5 // pred_check_branch
        %1707 = sbr.rel (%p1705) target = $region44
      $region43: #{sa_module_forward.1} parent=5 // pred_region
        %s1708 = ssub.s32 %s13, 2
        // Predicated region
        $region45: #{sa_module_forward.1} parent=43 // pred_check
          %p1709 = pneg %p131
        $region46: #{sa_module_forward.1} parent=43 // pred_check_branch
          %1711 = sbr.rel (%p1709) target = $region48
        $region47: #{sa_module_forward.1} parent=43 // pred_region
          %s1712 = sand.u32 %s116, 1
          %s1713 = scalar_lea.sflag [#allocation3], %s1712
          %s1714 = sand.u32 %s116, 1
          %s1715 = smul.addr %s1714, 32
          %s1716 = scalar_lea.vmem [#allocation2], %s1715
          %1717 = dma.done %s1713, 512
        $region48: #{sa_module_forward.1} parent=43 // pred_fallthru
          _
      $region44: #{sa_module_forward.1} parent=5 // pred_fallthru
        _
    $region6: #{sa_module_forward.1} parent=1 // loop_footer
      %s17 = sadd.s32 1, %s13
    $region7: #{sa_module_forward.1} parent=1 // loop_footer_branch
      %12 = sbr.rel target = $region3
    $region8: #{sa_module_forward.1} parent=1 // loop_exit
      _
    %1718 = vsyncpa [#allocation3], 1
    %s1719 = scalar_lea.sflag [#allocation3], 1
    %1720 = vsyncpa %s1719, 1

</llo_original>
